<compile_context>
chip_gen: v7x
topology: tpu7x:2x2x1
jax: 0.10.0
libtpu: 0.0.40
codegen_flags: <defaults>
</compile_context>

<pallas_src>
import functools
import math

import jax
import jax.numpy as jnp
from jax import lax
from jax.experimental import pallas as pl
from jax.experimental.pallas import tpu as pltpu


def _round_up(x, m):
    return ((x + m - 1) // m) * m


# ----------------------------------------------------------------------------
# Pallas kernel: pipelined (produce gi for chunk c) + (consume chunk c-1)
# GRU recurrence -> last hidden -> linear -> log_softmax.
# ----------------------------------------------------------------------------
def _gru_head_kernel(x_ref, wih_ref, whh_ref, bhh_ref, bin_ref,
                     wout_ref, bout_ref, pred_ref, h_scr, gi_buf,
                     *, Hp, B, Tc, T_valid, mask_tail):
    c = pl.program_id(0)
    nc = pl.num_programs(0) - 1          # number of real time chunks

    @pl.when(c == 0)
    def _init():
        # nn.GRU default: zero initial hidden state.
        h_scr[...] = jnp.zeros_like(h_scr)

    # ---- Produce: hoisted input-gate matmul for chunk c --------------------
    # Runs one chunk ahead of the consumer below and writes the other gi_buf
    # slot, so this big [Tc*B, D] x [D, 3Hp] MXU pass overlaps the
    # latency-bound serial recurrence of the previous chunk.
    @pl.when(c < nc)
    def _produce():
        xb = x_ref[...].astype(wih_ref.dtype)                     # bf16 cast in-kernel
        gi_buf[c % 2] = jnp.dot(xb, wih_ref[...],
                                preferred_element_type=jnp.float32)

    # ---- Consume: serial GRU recurrence over chunk c-1 ---------------------
    @pl.when(c > 0)
    def _consume():
        prev = (c - 1) % 2
        gi_prev = gi_buf.at[prev]         # ref view, no load
        whh = whh_ref[...]                # [Hp, 3Hp] bf16 (resident)
        bhh = bhh_ref[...]                # [1, 3Hp] f32 (b_hh with b_ir/b_iz folded in)
        b_in = bin_ref[...]               # [1, Hp]  f32 (n-gate input bias)
        h = h_scr[...]                    # [B, Hp]  f32 carry

        for t in range(Tc):               # static unroll -> static sublane slices
            gi_t = gi_prev[t * B:(t + 1) * B, :]                   # [B, 3Hp]
            gh = jnp.dot(h.astype(whh.dtype), whh,
                         preferred_element_type=jnp.float32) + bhh  # [B, 3Hp]
            # PyTorch GRU gate order (r, z, n); each slice is one 128-lane tile.
            r = jax.nn.sigmoid(gi_t[:, 0:Hp] + gh[:, 0:Hp])
            z = jax.nn.sigmoid(gi_t[:, Hp:2 * Hp] + gh[:, Hp:2 * Hp])
            n = jnp.tanh(gi_t[:, 2 * Hp:] + b_in + r * gh[:, 2 * Hp:])
            h_new = (1.0 - z) * n + z * h
            if mask_tail:
                # Padded timesteps (beyond the real sequence) freeze h.
                t_global = (c - 1) * Tc + t
                h_new = jnp.where(t_global < T_valid, h_new, h)
            h = h_new
        h_scr[...] = h

    # ---- Finalize: classifier + numerically-stable log_softmax -------------
    @pl.when(c == nc)
    def _finalize():
        h = h_scr[...]
        # Padded class columns carry a -1e30 bias -> exp() == 0, no effect.
        logits = jnp.dot(h.astype(wout_ref.dtype), wout_ref[...],
                         preferred_element_type=jnp.float32) + bout_ref[...]
        m = jnp.max(logits, axis=-1, keepdims=True)
        lse = jnp.log(jnp.sum(jnp.exp(logits - m), axis=-1, keepdims=True)) + m
        pred_ref[...] = logits - lse


# ----------------------------------------------------------------------------
# Parameter padding: place each GRU gate block at a 128-lane-aligned offset.
# Only the (tiny, resident) weights are padded -- never the streamed x.
# ----------------------------------------------------------------------------
def _gate_pad_cols(w, H, Hp):
    """w: [..., 3H] -> [..., 3Hp]; gate g moves to columns [g*Hp, g*Hp+H)."""
    parts = []
    for g in range(3):
        blk = w[..., g * H:(g + 1) * H]
        pad_spec = [(0, 0)] * (w.ndim - 1) + [(0, Hp - H)]
        parts.append(jnp.pad(blk, pad_spec))
    return jnp.concatenate(parts, axis=-1)


def _prepare_padded_params(params, Hp, Cp):
    H = params["hidden_size"]
    C = params["num_classes"]
    # W_ih^T: [D, 3H] -> [D, 3Hp]  (D left unpadded: full-dim block is legal)
    wih_t = _gate_pad_cols(params["wih"].T, H, Hp).astype(jnp.bfloat16)
    whh_t = _gate_pad_cols(params["whh"].T, H, Hp)                 # [H, 3Hp]
    whh_t = jnp.pad(whh_t, ((0, Hp - H), (0, 0))).astype(jnp.bfloat16)
    bih = _gate_pad_cols(params["bih"][None, :], H, Hp).astype(jnp.float32)
    bhh = _gate_pad_cols(params["bhh"][None, :], H, Hp).astype(jnp.float32)
    # Fold r/z input biases into b_hh (they always appear as gi+gh).  The
    # n-gate input bias must stay OUTSIDE r*(W_hn h + b_hn) -> keep separate.
    bhh_comb = bhh.at[:, :2 * Hp].add(bih[:, :2 * Hp])
    b_in = bih[:, 2 * Hp:]                                         # [1, Hp]
    wout_t = jnp.pad(params["wout"].T,
                     ((0, Hp - H), (0, Cp - C))).astype(jnp.bfloat16)
    bout = jnp.pad(params["bout"][None, :], ((0, 0), (0, Cp - C)),
                   constant_values=-1e30).astype(jnp.float32)
    return dict(wih_t=wih_t, whh_t=whh_t, bhh_comb=bhh_comb, bin=b_in,
                wout_t=wout_t, bout=bout)


# ----------------------------------------------------------------------------
# VMEM-aware chunk-length selection (v7x has 64 MiB VMEM vs 128 MiB v5e/v6e).
# ----------------------------------------------------------------------------
def _select_tc(T, B, D, Hp, vmem_budget_bytes):
    # The x block has Tc*B rows: they must be a multiple of 8 (f32 sublanes)
    # unless the block covers the whole array.
    step = 8 // math.gcd(B, 8)
    bytes_per_t = B * (2 * 3 * Hp + 2 * D) * 4     # gi (2 slots) + x (2 bufs), f32
    mem_cap = max(1, vmem_budget_bytes // max(1, bytes_per_t))
    cap = min(T, 32, mem_cap)                       # 32: keep static unroll sane
    if cap >= step:
        cap = (cap // step) * step
        tc = None
        for cand in range(cap, step - 1, -step):    # prefer Tc | T -> no x pad copy
            if T % cand == 0:
                tc = cand
                break
        if tc is None:
            tc = cap
    else:
        tc = T if T < step else step                # tiny T: single chunk covers all
    tp = pl.cdiv(T, tc) * tc
    return tc, tp


# ----------------------------------------------------------------------------
# Wrapper: zero-copy x, pad weights, call the kernel, slice classes back.
# ----------------------------------------------------------------------------
def gru_linear_logsoftmax(stacked, params):
    """stacked: [T, B, D] float32  ->  log-probs [B, C] float32."""
    T, B, D = stacked.shape
    if T == 0:
        raise ValueError("empty sequence: GRU head needs at least one timestep")
    H = params["hidden_size"]
    C = params["num_classes"]
    Hp = _round_up(H, 128)      # each gate slice = one lane tile
    Cp = _round_up(C, 128)      # lane-dense classifier output

    try:
        vmem_cap = pltpu.get_tpu_info().vmem_capacity_bytes
    except Exception:
        vmem_cap = 64 * 1024 * 1024
    Tc, Tp = _select_tc(T, B, D, Hp, vmem_cap // 4)
    NC = Tp // Tc

    # x is passed UNPADDED and UNCAST: [T,B,D] -> [T*B,D] is a free row-major
    # view, so the kernel streams the original f32 tensor straight from HBM.
    x2d = stacked.reshape(T * B, D)
    mask_tail = (Tp != T)
    if mask_tail:
        # Rare path (no Tc divides T): pad at most Tc-1 timesteps of zeros.
        x2d = jnp.pad(x2d, ((0, (Tp - T) * B), (0, 0)))

    pp = _prepare_padded_params(params, Hp, Cp)

    kernel = functools.partial(_gru_head_kernel, Hp=Hp, B=B, Tc=Tc,
                               T_valid=T, mask_tail=mask_tail)

    # Explicit VMEM budget (double-buffered x + gi, resident bf16 weights,
    # carry, output) -- v5e's scoped default is only ~16 MiB.
    need = (2 * Tc * B * D * 4
            + 2 * Tc * B * 3 * Hp * 4
            + 2 * 2 * (D * 3 * Hp + Hp * 3 * Hp + Hp * Cp)
            + 8 * Hp * 4 + 2 * 8 * Cp * 4 + (1 << 20))
    vmem_limit = int(min(64 * 1024 * 1024, max(32 * 1024 * 1024, 2 * need)))

    pred_padded = pl.pallas_call(
        kernel,
        out_shape=jax.ShapeDtypeStruct((B, Cp), jnp.float32),
        grid_spec=pltpu.PrefetchScalarGridSpec(
            num_scalar_prefetch=0,
            grid=(NC + 1,),      # +1 drain step: producer runs one chunk ahead
            in_specs=[
                # x chunk (f32, D unpadded; index clamped on the drain step)
                pl.BlockSpec((Tc * B, D), lambda c: (jnp.minimum(c, NC - 1), 0)),
                pl.BlockSpec((D, 3 * Hp), lambda c: (0, 0)),     # W_ih^T (resident)
                pl.BlockSpec((Hp, 3 * Hp), lambda c: (0, 0)),    # W_hh^T (resident)
                pl.BlockSpec((1, 3 * Hp), lambda c: (0, 0)),     # b_hh (+ folded b_ir/b_iz)
                pl.BlockSpec((1, Hp), lambda c: (0, 0)),         # b_in (n-gate input bias)
                pl.BlockSpec((Hp, Cp), lambda c: (0, 0)),        # W_out^T
                pl.BlockSpec((1, Cp), lambda c: (0, 0)),         # b_out (-1e30 on pads)
            ],
            out_specs=pl.BlockSpec((B, Cp), lambda c: (0, 0)),   # written on drain step
            scratch_shapes=[
                pltpu.VMEM((B, Hp), jnp.float32),                # carried hidden state
                pltpu.VMEM((2, Tc * B, 3 * Hp), jnp.float32),    # double-buffered gates
            ],
        ),
        compiler_params=pltpu.CompilerParams(
            dimension_semantics=("arbitrary",),                  # serial time carry
            vmem_limit_bytes=vmem_limit),
    )(x2d, pp["wih_t"], pp["whh_t"], pp["bhh_comb"], pp["bin"],
      pp["wout_t"], pp["bout"])

    return pred_padded[:, :C]


# ----------------------------------------------------------------------------
# Deterministic parameter init (single-layer GRU(D -> H) + Linear(H -> C),
# PyTorch default uniform(-1/sqrt(H), 1/sqrt(H)) init, PyTorch layouts).
# ----------------------------------------------------------------------------
def init_params(key, input_dim, hidden_size, num_classes):
    k = 1.0 / jnp.sqrt(jnp.float32(hidden_size))
    ks = jax.random.split(key, 6)
    return {
        "wih": jax.random.uniform(ks[0], (3 * hidden_size, input_dim),
                                  jnp.float32, -k, k),
        "whh": jax.random.uniform(ks[1], (3 * hidden_size, hidden_size),
                                  jnp.float32, -k, k),
        "bih": jax.random.uniform(ks[2], (3 * hidden_size,), jnp.float32, -k, k),
        "bhh": jax.random.uniform(ks[3], (3 * hidden_size,), jnp.float32, -k, k),
        "wout": jax.random.uniform(ks[4], (num_classes, hidden_size),
                                   jnp.float32, -k, k),
        "bout": jax.random.uniform(ks[5], (num_classes,), jnp.float32, -k, k),
        "input_dim": input_dim,
        "hidden_size": hidden_size,
        "num_classes": num_classes,
    }


# ----------------------------------------------------------------------------
# Pure-JAX f32 reference (mirrors the PyTorch GRU+Linear+LogSoftmax math).
# ----------------------------------------------------------------------------
def _reference_forward(stacked, params):
    T, B, _ = stacked.shape
    H = params["hidden_size"]
    wih, whh, bih, bhh = params["wih"], params["whh"], params["bih"], params["bhh"]

    def step(h, x_t):
        gi = x_t @ wih.T + bih
        gh = h @ whh.T + bhh
        r = jax.nn.sigmoid(gi[:, :H] + gh[:, :H])
        z = jax.nn.sigmoid(gi[:, H:2 * H] + gh[:, H:2 * H])
        n = jnp.tanh(gi[:, 2 * H:] + r * gh[:, 2 * H:])
        return (1.0 - z) * n + z * h, None

    h_last, _ = lax.scan(step, jnp.zeros((B, H), jnp.float32), stacked)
    logits = h_last @ params["wout"].T + params["bout"]
    return jax.nn.log_softmax(logits, axis=-1)


# ----------------------------------------------------------------------------
# CPCDecoder.forward equivalent
# ----------------------------------------------------------------------------
def cpc_decoder_forward(X, cpc_latents, cpc_contexts, cpc_hidden, params,
                        y=None, finished=False):
    if not finished:
        # TODO(synk): the `not finished` branch runs the externally trained CPC
        # model (self.cpc(...)) whose architecture is not defined in this module;
        # it (and the matplotlib/PIL plotting) has no in-script equivalent.
        raise NotImplementedError("CPC encoder pass is external to this module")

    # torch.cat(cpc_latents, dim=0) -> GRU -> linear -> log_softmax (Pallas)
    stacked = jnp.concatenate(cpc_latents, axis=0)                 # [T, B, D]
    pred = gru_linear_logsoftmax(stacked, params)                  # [B, C] log-probs

    if y is not None:
        y_idx = jnp.argmax(y, axis=1)
        # NLLLoss (mean) on log-probs + accuracy: tiny scalar glue, plain JAX.
        loss = -jnp.mean(jnp.take_along_axis(pred, y_idx[:, None], axis=1))
        pred_cls = jnp.argmax(pred, axis=1)
        accuracy = jnp.sum(pred_cls == y_idx) / pred.shape[0]
        return accuracy, loss, cpc_hidden, (pred_cls, y_idx)
    return pred, cpc_hidden


if __name__ == "__main__":
    B, D, H, C = 2, 32, 32, 4           # batch, latent dim, GRU hidden, classes
    key = jax.random.PRNGKey(0)
    k_params, k_lat1, k_lat2, k_ctx, k_y, k_h = jax.random.split(key, 6)

    params = init_params(k_params, input_dim=D, hidden_size=H, num_classes=C)

    # Two accumulated latent chunks (seq-major), as produced by earlier CPC calls.
    cpc_latents = [
        jax.random.normal(k_lat1, (4, B, D), jnp.float32),
        jax.random.normal(k_lat2, (4, B, D), jnp.float32),
    ]
    cpc_contexts = jax.random.normal(k_ctx, (4, B, H), jnp.float32)   # unused branch
    cpc_hidden = jnp.zeros((1, B, H), jnp.float32)                    # passed through
    y = jax.nn.one_hot(jax.random.randint(k_y, (B,), 0, C), C, dtype=jnp.float32)
    X = jnp.zeros((B, 8, 4, 16), jnp.float32)                         # unused when finished

    # With labels: (accuracy, loss, hidden, (pred_cls, y_cls))
    acc, loss, hidden, (pred_cls, y_cls) = cpc_decoder_forward(
        X, cpc_latents, cpc_contexts, cpc_hidden, params, y=y, finished=True)
    # Without labels: (log-prob pred, hidden)
    pred, hidden2 = cpc_decoder_forward(
        X, cpc_latents, cpc_contexts, cpc_hidden, params, y=None, finished=True)

    jax.block_until_ready((acc, loss, hidden, pred_cls, y_cls, pred, hidden2))
    assert pred.shape == (B, C)
    assert bool(jnp.all(jnp.isfinite(pred)))
    # log-softmax rows should sum to ~1 in prob space
    assert bool(jnp.all(jnp.abs(jnp.sum(jnp.exp(pred), axis=1) - 1.0) < 1e-3))
    # Compare against a pure-JAX f32 reference; tolerance covers the deliberate
    # bf16 casts of x / h / weights inside the kernel's matmuls.
    ref = _reference_forward(jnp.concatenate(cpc_latents, axis=0), params)
    max_err = float(jnp.max(jnp.abs(pred - ref)))
    assert max_err < 1e-1, f"kernel mismatch vs reference: {max_err}"
    print("KERNEL_OK")
</pallas_src>

<mosaic_0001>
module attributes {stable_mosaic.version = 11 : i64} {
  func.func @_gru_head_kernel(%arg0: i32, %arg1: memref<16x32xf32, #tpu.memory_space<vmem>>, %arg2: memref<32x384xbf16, #tpu.memory_space<vmem>>, %arg3: memref<128x384xbf16, #tpu.memory_space<vmem>>, %arg4: memref<1x384xf32, #tpu.memory_space<vmem>>, %arg5: memref<1x128xf32, #tpu.memory_space<vmem>>, %arg6: memref<128x128xbf16, #tpu.memory_space<vmem>>, %arg7: memref<1x128xf32, #tpu.memory_space<vmem>>, %arg8: memref<2x128xf32, #tpu.memory_space<vmem>>, %arg9: memref<2x128xf32, #tpu.memory_space<vmem>>, %arg10: memref<2x16x384xf32, #tpu.memory_space<vmem>>) attributes {dimension_semantics = [#tpu.dimension_semantics<arbitrary>], iteration_bounds = array<i64: 2>, scalar_prefetch = 0 : i64, scratch_operands = 2 : i64, tpu.core_type = #tpu.core_type<tc>, window_params = [{transform_indices = @transform_0, window_bounds = array<i64: 16, 32>}, {pipeline_mode = #tpu.pipeline_mode<synchronous>, transform_indices = @transform_1, window_bounds = array<i64: 32, 384>}, {pipeline_mode = #tpu.pipeline_mode<synchronous>, transform_indices = @transform_2, window_bounds = array<i64: 128, 384>}, {pipeline_mode = #tpu.pipeline_mode<synchronous>, transform_indices = @transform_3, window_bounds = array<i64: 1, 384>}, {pipeline_mode = #tpu.pipeline_mode<synchronous>, transform_indices = @transform_4, window_bounds = array<i64: 1, 128>}, {pipeline_mode = #tpu.pipeline_mode<synchronous>, transform_indices = @transform_5, window_bounds = array<i64: 128, 128>}, {pipeline_mode = #tpu.pipeline_mode<synchronous>, transform_indices = @transform_6, window_bounds = array<i64: 1, 128>}, {pipeline_mode = #tpu.pipeline_mode<synchronous>, transform_indices = @transform_7, window_bounds = array<i64: 2, 128>}]} {
    %c0_i32 = arith.constant 0 : i32
    %0 = arith.cmpi eq, %arg0, %c0_i32 : i32
    %1 = arith.extui %0 : i1 to i32
    %c0_i32_0 = arith.constant 0 : i32
    %2 = arith.cmpi ne, %1, %c0_i32_0 : i32
    scf.if %2 {
      %cst = arith.constant 0.000000e+00 : f32
      %12 = vector.broadcast %cst : f32 to vector<2x128xf32>
      %c0 = arith.constant 0 : index
      %c0_6 = arith.constant 0 : index
      %13 = vector.load %arg9[%c0, %c0_6] : memref<2x128xf32, #tpu.memory_space<vmem>>, vector<2x128xf32>
      tpu.vector_store %arg9[%c0, %c0_6], %12 {strides = array<i32>} : memref<2x128xf32, #tpu.memory_space<vmem>>, vector<2x128xf32>,
    } else {
    }
    %c1_i32 = arith.constant 1 : i32
    %3 = arith.cmpi slt, %arg0, %c1_i32 : i32
    %4 = arith.extui %3 : i1 to i32
    %c0_i32_1 = arith.constant 0 : i32
    %5 = arith.cmpi ne, %4, %c0_i32_1 : i32
    scf.if %5 {
      %c0 = arith.constant 0 : index
      %c0_6 = arith.constant 0 : index
      %12 = vector.load %arg1[%c0, %c0_6] : memref<16x32xf32, #tpu.memory_space<vmem>>, vector<16x32xf32>
      %13 = arith.truncf %12 : vector<16x32xf32> to vector<16x32xbf16>
      %c0_7 = arith.constant 0 : index
      %c0_8 = arith.constant 0 : index
      %14 = vector.load %arg2[%c0_7, %c0_8] : memref<32x384xbf16, #tpu.memory_space<vmem>>, vector<32x384xbf16>
      %cst = arith.constant dense<0.000000e+00> : vector<16x384xf32>
      %15 = tpu.matmul %13, %14, %cst {dimension_numbers = #tpu.dot_dimension_numbers<[1], [0], [0], [1], [0, 0, 1, 1], [], []>} : vector<16x32xbf16>, vector<32x384xbf16>, vector<16x384xf32> -> vector<16x384xf32>
      %c2_i32 = arith.constant 2 : i32
      %c0_i32_9 = arith.constant 0 : i32
      %16 = arith.cmpi eq, %c2_i32, %c0_i32_9 : i32
      %c1_i32_10 = arith.constant 1 : i32
      %17 = arith.select %16, %c1_i32_10, %c2_i32 : i32
      %18 = arith.remsi %arg0, %17 : i32
      %c0_i32_11 = arith.constant 0 : i32
      %19 = arith.cmpi ne, %18, %c0_i32_11 : i32
      %c0_i32_12 = arith.constant 0 : i32
      %20 = arith.cmpi slt, %18, %c0_i32_12 : i32
      %c0_i32_13 = arith.constant 0 : i32
      %21 = arith.cmpi slt, %17, %c0_i32_13 : i32
      %22 = arith.xori %20, %21 : i1
      %23 = arith.andi %22, %19 : i1
      %24 = arith.addi %18, %17 : i32
      %25 = arith.select %23, %24, %18 : i32
      %26 = arith.index_cast %25 : i32 to index
      %c0_14 = arith.constant 0 : index
      %c0_15 = arith.constant 0 : index
      %27 = vector.load %arg10[%26, %c0_14, %c0_15] : memref<2x16x384xf32, #tpu.memory_space<vmem>>, vector<1x16x384xf32>
      %28 = vector.shape_cast %27 : vector<1x16x384xf32> to vector<16x384xf32>
      %29 = vector.shape_cast %15 : vector<16x384xf32> to vector<1x16x384xf32>
      tpu.vector_store %arg10[%26, %c0_14, %c0_15], %29 {strides = array<i32>} : memref<2x16x384xf32, #tpu.memory_space<vmem>>, vector<1x16x384xf32>,
    } else {
    }
    %c0_i32_2 = arith.constant 0 : i32
    %6 = arith.cmpi sgt, %arg0, %c0_i32_2 : i32
    %7 = arith.extui %6 : i1 to i32
    %c0_i32_3 = arith.constant 0 : i32
    %8 = arith.cmpi ne, %7, %c0_i32_3 : i32
    scf.if %8 {
      %c1_i32_6 = arith.constant 1 : i32
      %12 = arith.subi %arg0, %c1_i32_6 : i32
      %c2_i32 = arith.constant 2 : i32
      %c0_i32_7 = arith.constant 0 : i32
      %13 = arith.cmpi eq, %c2_i32, %c0_i32_7 : i32
      %c1_i32_8 = arith.constant 1 : i32
      %14 = arith.select %13, %c1_i32_8, %c2_i32 : i32
      %15 = arith.remsi %12, %14 : i32
      %c0_i32_9 = arith.constant 0 : i32
      %16 = arith.cmpi ne, %15, %c0_i32_9 : i32
      %c0_i32_10 = arith.constant 0 : i32
      %17 = arith.cmpi slt, %15, %c0_i32_10 : i32
      %c0_i32_11 = arith.constant 0 : i32
      %18 = arith.cmpi slt, %14, %c0_i32_11 : i32
      %19 = arith.xori %17, %18 : i1
      %20 = arith.andi %19, %16 : i1
      %21 = arith.addi %15, %14 : i32
      %22 = arith.select %20, %21, %15 : i32
      %c0 = arith.constant 0 : index
      %c0_12 = arith.constant 0 : index
      %23 = vector.load %arg3[%c0, %c0_12] : memref<128x384xbf16, #tpu.memory_space<vmem>>, vector<128x384xbf16>
      %c0_13 = arith.constant 0 : index
      %c0_14 = arith.constant 0 : index
      %24 = vector.load %arg4[%c0_13, %c0_14] : memref<1x384xf32, #tpu.memory_space<vmem>>, vector<1x384xf32>
      %c0_15 = arith.constant 0 : index
      %c0_16 = arith.constant 0 : index
      %25 = vector.load %arg5[%c0_15, %c0_16] : memref<1x128xf32, #tpu.memory_space<vmem>>, vector<1x128xf32>
      %c0_17 = arith.constant 0 : index
      %c0_18 = arith.constant 0 : index
      %26 = vector.load %arg9[%c0_17, %c0_18] : memref<2x128xf32, #tpu.memory_space<vmem>>, vector<2x128xf32>
      %c0_i32_19 = arith.constant 0 : i32
      %c0_i32_20 = arith.constant 0 : i32
      %27 = tpu.memref_slice %arg10[%22, %c0_i32_19, %c0_i32_20] : memref<2x16x384xf32, #tpu.memory_space<vmem>> -> memref<1x16x384xf32, #tpu.memory_space<vmem>>
      %28 = tpu.memref_squeeze %27 : memref<1x16x384xf32, #tpu.memory_space<vmem>> -> memref<16x384xf32, #tpu.memory_space<vmem>>
      %c0_21 = arith.constant 0 : index
      %c0_22 = arith.constant 0 : index
      %29 = vector.load %28[%c0_21, %c0_22] : memref<16x384xf32, #tpu.memory_space<vmem>>, vector<2x384xf32>
      %30 = arith.truncf %26 : vector<2x128xf32> to vector<2x128xbf16>
      %cst = arith.constant dense<0.000000e+00> : vector<2x384xf32>
      %31 = tpu.matmul %30, %23, %cst {dimension_numbers = #tpu.dot_dimension_numbers<[1], [0], [0], [1], [0, 0, 1, 1], [], []>} : vector<2x128xbf16>, vector<128x384xbf16>, vector<2x384xf32> -> vector<2x384xf32>
      %32 = vector.broadcast %24 : vector<1x384xf32> to vector<2x384xf32>
      %33 = arith.addf %31, %32 : vector<2x384xf32>
      %34 = vector.extract_strided_slice %29 {offsets = [0, 0], sizes = [2, 128], strides = [1, 1]} : vector<2x384xf32> to vector<2x128xf32>
      %35 = vector.extract_strided_slice %33 {offsets = [0, 0], sizes = [2, 128], strides = [1, 1]} : vector<2x384xf32> to vector<2x128xf32>
      %36 = arith.addf %34, %35 : vector<2x128xf32>
      %37 = arith.negf %36 : vector<2x128xf32>
      %38 = math.exp %37 : vector<2x128xf32>
      %cst_23 = arith.constant 1.000000e+00 : f32
      %39 = vector.broadcast %cst_23 : f32 to vector<2x128xf32>
      %40 = arith.addf %39, %38 : vector<2x128xf32>
      %41 = arith.divf %39, %40 : vector<2x128xf32>
      %42 = vector.extract_strided_slice %29 {offsets = [0, 128], sizes = [2, 128], strides = [1, 1]} : vector<2x384xf32> to vector<2x128xf32>
      %43 = vector.extract_strided_slice %33 {offsets = [0, 128], sizes = [2, 128], strides = [1, 1]} : vector<2x384xf32> to vector<2x128xf32>
      %44 = arith.addf %42, %43 : vector<2x128xf32>
      %45 = arith.negf %44 : vector<2x128xf32>
      %46 = math.exp %45 : vector<2x128xf32>
      %cst_24 = arith.constant 1.000000e+00 : f32
      %47 = vector.broadcast %cst_24 : f32 to vector<2x128xf32>
      %48 = arith.addf %47, %46 : vector<2x128xf32>
      %49 = arith.divf %47, %48 : vector<2x128xf32>
      %50 = vector.extract_strided_slice %29 {offsets = [0, 256], sizes = [2, 128], strides = [1, 1]} : vector<2x384xf32> to vector<2x128xf32>
      %51 = vector.broadcast %25 : vector<1x128xf32> to vector<2x128xf32>
      %52 = arith.addf %50, %51 : vector<2x128xf32>
      %53 = vector.extract_strided_slice %33 {offsets = [0, 256], sizes = [2, 128], strides = [1, 1]} : vector<2x384xf32> to vector<2x128xf32>
      %54 = arith.mulf %41, %53 : vector<2x128xf32>
      %55 = arith.addf %52, %54 : vector<2x128xf32>
      %56 = math.tanh %55 : vector<2x128xf32>
      %cst_25 = arith.constant 1.000000e+00 : f32
      %57 = vector.broadcast %cst_25 : f32 to vector<2x128xf32>
      %58 = arith.subf %57, %49 : vector<2x128xf32>
      %59 = arith.mulf %58, %56 : vector<2x128xf32>
      %60 = arith.mulf %49, %26 : vector<2x128xf32>
      %61 = arith.addf %59, %60 : vector<2x128xf32>
      %c0_i32_26 = arith.constant 0 : i32
      %c0_i32_27 = arith.constant 0 : i32
      %62 = tpu.memref_slice %arg10[%22, %c0_i32_26, %c0_i32_27] : memref<2x16x384xf32, #tpu.memory_space<vmem>> -> memref<1x16x384xf32, #tpu.memory_space<vmem>>
      %63 = tpu.memref_squeeze %62 : memref<1x16x384xf32, #tpu.memory_space<vmem>> -> memref<16x384xf32, #tpu.memory_space<vmem>>
      %c2 = arith.constant 2 : index
      %c0_28 = arith.constant 0 : index
      %64 = vector.load %63[%c2, %c0_28] : memref<16x384xf32, #tpu.memory_space<vmem>>, vector<2x384xf32>
      %65 = arith.truncf %61 : vector<2x128xf32> to vector<2x128xbf16>
      %cst_29 = arith.constant dense<0.000000e+00> : vector<2x384xf32>
      %66 = tpu.matmul %65, %23, %cst_29 {dimension_numbers = #tpu.dot_dimension_numbers<[1], [0], [0], [1], [0, 0, 1, 1], [], []>} : vector<2x128xbf16>, vector<128x384xbf16>, vector<2x384xf32> -> vector<2x384xf32>
      %67 = vector.broadcast %24 : vector<1x384xf32> to vector<2x384xf32>
      %68 = arith.addf %66, %67 : vector<2x384xf32>
      %69 = vector.extract_strided_slice %64 {offsets = [0, 0], sizes = [2, 128], strides = [1, 1]} : vector<2x384xf32> to vector<2x128xf32>
      %70 = vector.extract_strided_slice %68 {offsets = [0, 0], sizes = [2, 128], strides = [1, 1]} : vector<2x384xf32> to vector<2x128xf32>
      %71 = arith.addf %69, %70 : vector<2x128xf32>
      %72 = arith.negf %71 : vector<2x128xf32>
      %73 = math.exp %72 : vector<2x128xf32>
      %cst_30 = arith.constant 1.000000e+00 : f32
      %74 = vector.broadcast %cst_30 : f32 to vector<2x128xf32>
      %75 = arith.addf %74, %73 : vector<2x128xf32>
      %76 = arith.divf %74, %75 : vector<2x128xf32>
      %77 = vector.extract_strided_slice %64 {offsets = [0, 128], sizes = [2, 128], strides = [1, 1]} : vector<2x384xf32> to vector<2x128xf32>
      %78 = vector.extract_strided_slice %68 {offsets = [0, 128], sizes = [2, 128], strides = [1, 1]} : vector<2x384xf32> to vector<2x128xf32>
      %79 = arith.addf %77, %78 : vector<2x128xf32>
      %80 = arith.negf %79 : vector<2x128xf32>
      %81 = math.exp %80 : vector<2x128xf32>
      %cst_31 = arith.constant 1.000000e+00 : f32
      %82 = vector.broadcast %cst_31 : f32 to vector<2x128xf32>
      %83 = arith.addf %82, %81 : vector<2x128xf32>
      %84 = arith.divf %82, %83 : vector<2x128xf32>
      %85 = vector.extract_strided_slice %64 {offsets = [0, 256], sizes = [2, 128], strides = [1, 1]} : vector<2x384xf32> to vector<2x128xf32>
      %86 = vector.broadcast %25 : vector<1x128xf32> to vector<2x128xf32>
      %87 = arith.addf %85, %86 : vector<2x128xf32>
      %88 = vector.extract_strided_slice %68 {offsets = [0, 256], sizes = [2, 128], strides = [1, 1]} : vector<2x384xf32> to vector<2x128xf32>
      %89 = arith.mulf %76, %88 : vector<2x128xf32>
      %90 = arith.addf %87, %89 : vector<2x128xf32>
      %91 = math.tanh %90 : vector<2x128xf32>
      %cst_32 = arith.constant 1.000000e+00 : f32
      %92 = vector.broadcast %cst_32 : f32 to vector<2x128xf32>
      %93 = arith.subf %92, %84 : vector<2x128xf32>
      %94 = arith.mulf %93, %91 : vector<2x128xf32>
      %95 = arith.mulf %84, %61 : vector<2x128xf32>
      %96 = arith.addf %94, %95 : vector<2x128xf32>
      %c0_i32_33 = arith.constant 0 : i32
      %c0_i32_34 = arith.constant 0 : i32
      %97 = tpu.memref_slice %arg10[%22, %c0_i32_33, %c0_i32_34] : memref<2x16x384xf32, #tpu.memory_space<vmem>> -> memref<1x16x384xf32, #tpu.memory_space<vmem>>
      %98 = tpu.memref_squeeze %97 : memref<1x16x384xf32, #tpu.memory_space<vmem>> -> memref<16x384xf32, #tpu.memory_space<vmem>>
      %c4 = arith.constant 4 : index
      %c0_35 = arith.constant 0 : index
      %99 = vector.load %98[%c4, %c0_35] : memref<16x384xf32, #tpu.memory_space<vmem>>, vector<2x384xf32>
      %100 = arith.truncf %96 : vector<2x128xf32> to vector<2x128xbf16>
      %cst_36 = arith.constant dense<0.000000e+00> : vector<2x384xf32>
      %101 = tpu.matmul %100, %23, %cst_36 {dimension_numbers = #tpu.dot_dimension_numbers<[1], [0], [0], [1], [0, 0, 1, 1], [], []>} : vector<2x128xbf16>, vector<128x384xbf16>, vector<2x384xf32> -> vector<2x384xf32>
      %102 = vector.broadcast %24 : vector<1x384xf32> to vector<2x384xf32>
      %103 = arith.addf %101, %102 : vector<2x384xf32>
      %104 = vector.extract_strided_slice %99 {offsets = [0, 0], sizes = [2, 128], strides = [1, 1]} : vector<2x384xf32> to vector<2x128xf32>
      %105 = vector.extract_strided_slice %103 {offsets = [0, 0], sizes = [2, 128], strides = [1, 1]} : vector<2x384xf32> to vector<2x128xf32>
      %106 = arith.addf %104, %105 : vector<2x128xf32>
      %107 = arith.negf %106 : vector<2x128xf32>
      %108 = math.exp %107 : vector<2x128xf32>
      %cst_37 = arith.constant 1.000000e+00 : f32
      %109 = vector.broadcast %cst_37 : f32 to vector<2x128xf32>
      %110 = arith.addf %109, %108 : vector<2x128xf32>
      %111 = arith.divf %109, %110 : vector<2x128xf32>
      %112 = vector.extract_strided_slice %99 {offsets = [0, 128], sizes = [2, 128], strides = [1, 1]} : vector<2x384xf32> to vector<2x128xf32>
      %113 = vector.extract_strided_slice %103 {offsets = [0, 128], sizes = [2, 128], strides = [1, 1]} : vector<2x384xf32> to vector<2x128xf32>
      %114 = arith.addf %112, %113 : vector<2x128xf32>
      %115 = arith.negf %114 : vector<2x128xf32>
      %116 = math.exp %115 : vector<2x128xf32>
      %cst_38 = arith.constant 1.000000e+00 : f32
      %117 = vector.broadcast %cst_38 : f32 to vector<2x128xf32>
      %118 = arith.addf %117, %116 : vector<2x128xf32>
      %119 = arith.divf %117, %118 : vector<2x128xf32>
      %120 = vector.extract_strided_slice %99 {offsets = [0, 256], sizes = [2, 128], strides = [1, 1]} : vector<2x384xf32> to vector<2x128xf32>
      %121 = vector.broadcast %25 : vector<1x128xf32> to vector<2x128xf32>
      %122 = arith.addf %120, %121 : vector<2x128xf32>
      %123 = vector.extract_strided_slice %103 {offsets = [0, 256], sizes = [2, 128], strides = [1, 1]} : vector<2x384xf32> to vector<2x128xf32>
      %124 = arith.mulf %111, %123 : vector<2x128xf32>
      %125 = arith.addf %122, %124 : vector<2x128xf32>
      %126 = math.tanh %125 : vector<2x128xf32>
      %cst_39 = arith.constant 1.000000e+00 : f32
      %127 = vector.broadcast %cst_39 : f32 to vector<2x128xf32>
      %128 = arith.subf %127, %119 : vector<2x128xf32>
      %129 = arith.mulf %128, %126 : vector<2x128xf32>
      %130 = arith.mulf %119, %96 : vector<2x128xf32>
      %131 = arith.addf %129, %130 : vector<2x128xf32>
      %c0_i32_40 = arith.constant 0 : i32
      %c0_i32_41 = arith.constant 0 : i32
      %132 = tpu.memref_slice %arg10[%22, %c0_i32_40, %c0_i32_41] : memref<2x16x384xf32, #tpu.memory_space<vmem>> -> memref<1x16x384xf32, #tpu.memory_space<vmem>>
      %133 = tpu.memref_squeeze %132 : memref<1x16x384xf32, #tpu.memory_space<vmem>> -> memref<16x384xf32, #tpu.memory_space<vmem>>
      %c6 = arith.constant 6 : index
      %c0_42 = arith.constant 0 : index
      %134 = vector.load %133[%c6, %c0_42] : memref<16x384xf32, #tpu.memory_space<vmem>>, vector<2x384xf32>
      %135 = arith.truncf %131 : vector<2x128xf32> to vector<2x128xbf16>
      %cst_43 = arith.constant dense<0.000000e+00> : vector<2x384xf32>
      %136 = tpu.matmul %135, %23, %cst_43 {dimension_numbers = #tpu.dot_dimension_numbers<[1], [0], [0], [1], [0, 0, 1, 1], [], []>} : vector<2x128xbf16>, vector<128x384xbf16>, vector<2x384xf32> -> vector<2x384xf32>
      %137 = vector.broadcast %24 : vector<1x384xf32> to vector<2x384xf32>
      %138 = arith.addf %136, %137 : vector<2x384xf32>
      %139 = vector.extract_strided_slice %134 {offsets = [0, 0], sizes = [2, 128], strides = [1, 1]} : vector<2x384xf32> to vector<2x128xf32>
      %140 = vector.extract_strided_slice %138 {offsets = [0, 0], sizes = [2, 128], strides = [1, 1]} : vector<2x384xf32> to vector<2x128xf32>
      %141 = arith.addf %139, %140 : vector<2x128xf32>
      %142 = arith.negf %141 : vector<2x128xf32>
      %143 = math.exp %142 : vector<2x128xf32>
      %cst_44 = arith.constant 1.000000e+00 : f32
      %144 = vector.broadcast %cst_44 : f32 to vector<2x128xf32>
      %145 = arith.addf %144, %143 : vector<2x128xf32>
      %146 = arith.divf %144, %145 : vector<2x128xf32>
      %147 = vector.extract_strided_slice %134 {offsets = [0, 128], sizes = [2, 128], strides = [1, 1]} : vector<2x384xf32> to vector<2x128xf32>
      %148 = vector.extract_strided_slice %138 {offsets = [0, 128], sizes = [2, 128], strides = [1, 1]} : vector<2x384xf32> to vector<2x128xf32>
      %149 = arith.addf %147, %148 : vector<2x128xf32>
      %150 = arith.negf %149 : vector<2x128xf32>
      %151 = math.exp %150 : vector<2x128xf32>
      %cst_45 = arith.constant 1.000000e+00 : f32
      %152 = vector.broadcast %cst_45 : f32 to vector<2x128xf32>
      %153 = arith.addf %152, %151 : vector<2x128xf32>
      %154 = arith.divf %152, %153 : vector<2x128xf32>
      %155 = vector.extract_strided_slice %134 {offsets = [0, 256], sizes = [2, 128], strides = [1, 1]} : vector<2x384xf32> to vector<2x128xf32>
      %156 = vector.broadcast %25 : vector<1x128xf32> to vector<2x128xf32>
      %157 = arith.addf %155, %156 : vector<2x128xf32>
      %158 = vector.extract_strided_slice %138 {offsets = [0, 256], sizes = [2, 128], strides = [1, 1]} : vector<2x384xf32> to vector<2x128xf32>
      %159 = arith.mulf %146, %158 : vector<2x128xf32>
      %160 = arith.addf %157, %159 : vector<2x128xf32>
      %161 = math.tanh %160 : vector<2x128xf32>
      %cst_46 = arith.constant 1.000000e+00 : f32
      %162 = vector.broadcast %cst_46 : f32 to vector<2x128xf32>
      %163 = arith.subf %162, %154 : vector<2x128xf32>
      %164 = arith.mulf %163, %161 : vector<2x128xf32>
      %165 = arith.mulf %154, %131 : vector<2x128xf32>
      %166 = arith.addf %164, %165 : vector<2x128xf32>
      %c0_i32_47 = arith.constant 0 : i32
      %c0_i32_48 = arith.constant 0 : i32
      %167 = tpu.memref_slice %arg10[%22, %c0_i32_47, %c0_i32_48] : memref<2x16x384xf32, #tpu.memory_space<vmem>> -> memref<1x16x384xf32, #tpu.memory_space<vmem>>
      %168 = tpu.memref_squeeze %167 : memref<1x16x384xf32, #tpu.memory_space<vmem>> -> memref<16x384xf32, #tpu.memory_space<vmem>>
      %c8 = arith.constant 8 : index
      %c0_49 = arith.constant 0 : index
      %169 = vector.load %168[%c8, %c0_49] : memref<16x384xf32, #tpu.memory_space<vmem>>, vector<2x384xf32>
      %170 = arith.truncf %166 : vector<2x128xf32> to vector<2x128xbf16>
      %cst_50 = arith.constant dense<0.000000e+00> : vector<2x384xf32>
      %171 = tpu.matmul %170, %23, %cst_50 {dimension_numbers = #tpu.dot_dimension_numbers<[1], [0], [0], [1], [0, 0, 1, 1], [], []>} : vector<2x128xbf16>, vector<128x384xbf16>, vector<2x384xf32> -> vector<2x384xf32>
      %172 = vector.broadcast %24 : vector<1x384xf32> to vector<2x384xf32>
      %173 = arith.addf %171, %172 : vector<2x384xf32>
      %174 = vector.extract_strided_slice %169 {offsets = [0, 0], sizes = [2, 128], strides = [1, 1]} : vector<2x384xf32> to vector<2x128xf32>
      %175 = vector.extract_strided_slice %173 {offsets = [0, 0], sizes = [2, 128], strides = [1, 1]} : vector<2x384xf32> to vector<2x128xf32>
      %176 = arith.addf %174, %175 : vector<2x128xf32>
      %177 = arith.negf %176 : vector<2x128xf32>
      %178 = math.exp %177 : vector<2x128xf32>
      %cst_51 = arith.constant 1.000000e+00 : f32
      %179 = vector.broadcast %cst_51 : f32 to vector<2x128xf32>
      %180 = arith.addf %179, %178 : vector<2x128xf32>
      %181 = arith.divf %179, %180 : vector<2x128xf32>
      %182 = vector.extract_strided_slice %169 {offsets = [0, 128], sizes = [2, 128], strides = [1, 1]} : vector<2x384xf32> to vector<2x128xf32>
      %183 = vector.extract_strided_slice %173 {offsets = [0, 128], sizes = [2, 128], strides = [1, 1]} : vector<2x384xf32> to vector<2x128xf32>
      %184 = arith.addf %182, %183 : vector<2x128xf32>
      %185 = arith.negf %184 : vector<2x128xf32>
      %186 = math.exp %185 : vector<2x128xf32>
      %cst_52 = arith.constant 1.000000e+00 : f32
      %187 = vector.broadcast %cst_52 : f32 to vector<2x128xf32>
      %188 = arith.addf %187, %186 : vector<2x128xf32>
      %189 = arith.divf %187, %188 : vector<2x128xf32>
      %190 = vector.extract_strided_slice %169 {offsets = [0, 256], sizes = [2, 128], strides = [1, 1]} : vector<2x384xf32> to vector<2x128xf32>
      %191 = vector.broadcast %25 : vector<1x128xf32> to vector<2x128xf32>
      %192 = arith.addf %190, %191 : vector<2x128xf32>
      %193 = vector.extract_strided_slice %173 {offsets = [0, 256], sizes = [2, 128], strides = [1, 1]} : vector<2x384xf32> to vector<2x128xf32>
      %194 = arith.mulf %181, %193 : vector<2x128xf32>
      %195 = arith.addf %192, %194 : vector<2x128xf32>
      %196 = math.tanh %195 : vector<2x128xf32>
      %cst_53 = arith.constant 1.000000e+00 : f32
      %197 = vector.broadcast %cst_53 : f32 to vector<2x128xf32>
      %198 = arith.subf %197, %189 : vector<2x128xf32>
      %199 = arith.mulf %198, %196 : vector<2x128xf32>
      %200 = arith.mulf %189, %166 : vector<2x128xf32>
      %201 = arith.addf %199, %200 : vector<2x128xf32>
      %c0_i32_54 = arith.constant 0 : i32
      %c0_i32_55 = arith.constant 0 : i32
      %202 = tpu.memref_slice %arg10[%22, %c0_i32_54, %c0_i32_55] : memref<2x16x384xf32, #tpu.memory_space<vmem>> -> memref<1x16x384xf32, #tpu.memory_space<vmem>>
      %203 = tpu.memref_squeeze %202 : memref<1x16x384xf32, #tpu.memory_space<vmem>> -> memref<16x384xf32, #tpu.memory_space<vmem>>
      %c10 = arith.constant 10 : index
      %c0_56 = arith.constant 0 : index
      %204 = vector.load %203[%c10, %c0_56] : memref<16x384xf32, #tpu.memory_space<vmem>>, vector<2x384xf32>
      %205 = arith.truncf %201 : vector<2x128xf32> to vector<2x128xbf16>
      %cst_57 = arith.constant dense<0.000000e+00> : vector<2x384xf32>
      %206 = tpu.matmul %205, %23, %cst_57 {dimension_numbers = #tpu.dot_dimension_numbers<[1], [0], [0], [1], [0, 0, 1, 1], [], []>} : vector<2x128xbf16>, vector<128x384xbf16>, vector<2x384xf32> -> vector<2x384xf32>
      %207 = vector.broadcast %24 : vector<1x384xf32> to vector<2x384xf32>
      %208 = arith.addf %206, %207 : vector<2x384xf32>
      %209 = vector.extract_strided_slice %204 {offsets = [0, 0], sizes = [2, 128], strides = [1, 1]} : vector<2x384xf32> to vector<2x128xf32>
      %210 = vector.extract_strided_slice %208 {offsets = [0, 0], sizes = [2, 128], strides = [1, 1]} : vector<2x384xf32> to vector<2x128xf32>
      %211 = arith.addf %209, %210 : vector<2x128xf32>
      %212 = arith.negf %211 : vector<2x128xf32>
      %213 = math.exp %212 : vector<2x128xf32>
      %cst_58 = arith.constant 1.000000e+00 : f32
      %214 = vector.broadcast %cst_58 : f32 to vector<2x128xf32>
      %215 = arith.addf %214, %213 : vector<2x128xf32>
      %216 = arith.divf %214, %215 : vector<2x128xf32>
      %217 = vector.extract_strided_slice %204 {offsets = [0, 128], sizes = [2, 128], strides = [1, 1]} : vector<2x384xf32> to vector<2x128xf32>
      %218 = vector.extract_strided_slice %208 {offsets = [0, 128], sizes = [2, 128], strides = [1, 1]} : vector<2x384xf32> to vector<2x128xf32>
      %219 = arith.addf %217, %218 : vector<2x128xf32>
      %220 = arith.negf %219 : vector<2x128xf32>
      %221 = math.exp %220 : vector<2x128xf32>
      %cst_59 = arith.constant 1.000000e+00 : f32
      %222 = vector.broadcast %cst_59 : f32 to vector<2x128xf32>
      %223 = arith.addf %222, %221 : vector<2x128xf32>
      %224 = arith.divf %222, %223 : vector<2x128xf32>
      %225 = vector.extract_strided_slice %204 {offsets = [0, 256], sizes = [2, 128], strides = [1, 1]} : vector<2x384xf32> to vector<2x128xf32>
      %226 = vector.broadcast %25 : vector<1x128xf32> to vector<2x128xf32>
      %227 = arith.addf %225, %226 : vector<2x128xf32>
      %228 = vector.extract_strided_slice %208 {offsets = [0, 256], sizes = [2, 128], strides = [1, 1]} : vector<2x384xf32> to vector<2x128xf32>
      %229 = arith.mulf %216, %228 : vector<2x128xf32>
      %230 = arith.addf %227, %229 : vector<2x128xf32>
      %231 = math.tanh %230 : vector<2x128xf32>
      %cst_60 = arith.constant 1.000000e+00 : f32
      %232 = vector.broadcast %cst_60 : f32 to vector<2x128xf32>
      %233 = arith.subf %232, %224 : vector<2x128xf32>
      %234 = arith.mulf %233, %231 : vector<2x128xf32>
      %235 = arith.mulf %224, %201 : vector<2x128xf32>
      %236 = arith.addf %234, %235 : vector<2x128xf32>
      %c0_i32_61 = arith.constant 0 : i32
      %c0_i32_62 = arith.constant 0 : i32
      %237 = tpu.memref_slice %arg10[%22, %c0_i32_61, %c0_i32_62] : memref<2x16x384xf32, #tpu.memory_space<vmem>> -> memref<1x16x384xf32, #tpu.memory_space<vmem>>
      %238 = tpu.memref_squeeze %237 : memref<1x16x384xf32, #tpu.memory_space<vmem>> -> memref<16x384xf32, #tpu.memory_space<vmem>>
      %c12 = arith.constant 12 : index
      %c0_63 = arith.constant 0 : index
      %239 = vector.load %238[%c12, %c0_63] : memref<16x384xf32, #tpu.memory_space<vmem>>, vector<2x384xf32>
      %240 = arith.truncf %236 : vector<2x128xf32> to vector<2x128xbf16>
      %cst_64 = arith.constant dense<0.000000e+00> : vector<2x384xf32>
      %241 = tpu.matmul %240, %23, %cst_64 {dimension_numbers = #tpu.dot_dimension_numbers<[1], [0], [0], [1], [0, 0, 1, 1], [], []>} : vector<2x128xbf16>, vector<128x384xbf16>, vector<2x384xf32> -> vector<2x384xf32>
      %242 = vector.broadcast %24 : vector<1x384xf32> to vector<2x384xf32>
      %243 = arith.addf %241, %242 : vector<2x384xf32>
      %244 = vector.extract_strided_slice %239 {offsets = [0, 0], sizes = [2, 128], strides = [1, 1]} : vector<2x384xf32> to vector<2x128xf32>
      %245 = vector.extract_strided_slice %243 {offsets = [0, 0], sizes = [2, 128], strides = [1, 1]} : vector<2x384xf32> to vector<2x128xf32>
      %246 = arith.addf %244, %245 : vector<2x128xf32>
      %247 = arith.negf %246 : vector<2x128xf32>
      %248 = math.exp %247 : vector<2x128xf32>
      %cst_65 = arith.constant 1.000000e+00 : f32
      %249 = vector.broadcast %cst_65 : f32 to vector<2x128xf32>
      %250 = arith.addf %249, %248 : vector<2x128xf32>
      %251 = arith.divf %249, %250 : vector<2x128xf32>
      %252 = vector.extract_strided_slice %239 {offsets = [0, 128], sizes = [2, 128], strides = [1, 1]} : vector<2x384xf32> to vector<2x128xf32>
      %253 = vector.extract_strided_slice %243 {offsets = [0, 128], sizes = [2, 128], strides = [1, 1]} : vector<2x384xf32> to vector<2x128xf32>
      %254 = arith.addf %252, %253 : vector<2x128xf32>
      %255 = arith.negf %254 : vector<2x128xf32>
      %256 = math.exp %255 : vector<2x128xf32>
      %cst_66 = arith.constant 1.000000e+00 : f32
      %257 = vector.broadcast %cst_66 : f32 to vector<2x128xf32>
      %258 = arith.addf %257, %256 : vector<2x128xf32>
      %259 = arith.divf %257, %258 : vector<2x128xf32>
      %260 = vector.extract_strided_slice %239 {offsets = [0, 256], sizes = [2, 128], strides = [1, 1]} : vector<2x384xf32> to vector<2x128xf32>
      %261 = vector.broadcast %25 : vector<1x128xf32> to vector<2x128xf32>
      %262 = arith.addf %260, %261 : vector<2x128xf32>
      %263 = vector.extract_strided_slice %243 {offsets = [0, 256], sizes = [2, 128], strides = [1, 1]} : vector<2x384xf32> to vector<2x128xf32>
      %264 = arith.mulf %251, %263 : vector<2x128xf32>
      %265 = arith.addf %262, %264 : vector<2x128xf32>
      %266 = math.tanh %265 : vector<2x128xf32>
      %cst_67 = arith.constant 1.000000e+00 : f32
      %267 = vector.broadcast %cst_67 : f32 to vector<2x128xf32>
      %268 = arith.subf %267, %259 : vector<2x128xf32>
      %269 = arith.mulf %268, %266 : vector<2x128xf32>
      %270 = arith.mulf %259, %236 : vector<2x128xf32>
      %271 = arith.addf %269, %270 : vector<2x128xf32>
      %c0_i32_68 = arith.constant 0 : i32
      %c0_i32_69 = arith.constant 0 : i32
      %272 = tpu.memref_slice %arg10[%22, %c0_i32_68, %c0_i32_69] : memref<2x16x384xf32, #tpu.memory_space<vmem>> -> memref<1x16x384xf32, #tpu.memory_space<vmem>>
      %273 = tpu.memref_squeeze %272 : memref<1x16x384xf32, #tpu.memory_space<vmem>> -> memref<16x384xf32, #tpu.memory_space<vmem>>
      %c14 = arith.constant 14 : index
      %c0_70 = arith.constant 0 : index
      %274 = vector.load %273[%c14, %c0_70] : memref<16x384xf32, #tpu.memory_space<vmem>>, vector<2x384xf32>
      %275 = arith.truncf %271 : vector<2x128xf32> to vector<2x128xbf16>
      %cst_71 = arith.constant dense<0.000000e+00> : vector<2x384xf32>
      %276 = tpu.matmul %275, %23, %cst_71 {dimension_numbers = #tpu.dot_dimension_numbers<[1], [0], [0], [1], [0, 0, 1, 1], [], []>} : vector<2x128xbf16>, vector<128x384xbf16>, vector<2x384xf32> -> vector<2x384xf32>
      %277 = vector.broadcast %24 : vector<1x384xf32> to vector<2x384xf32>
      %278 = arith.addf %276, %277 : vector<2x384xf32>
      %279 = vector.extract_strided_slice %274 {offsets = [0, 0], sizes = [2, 128], strides = [1, 1]} : vector<2x384xf32> to vector<2x128xf32>
      %280 = vector.extract_strided_slice %278 {offsets = [0, 0], sizes = [2, 128], strides = [1, 1]} : vector<2x384xf32> to vector<2x128xf32>
      %281 = arith.addf %279, %280 : vector<2x128xf32>
      %282 = arith.negf %281 : vector<2x128xf32>
      %283 = math.exp %282 : vector<2x128xf32>
      %cst_72 = arith.constant 1.000000e+00 : f32
      %284 = vector.broadcast %cst_72 : f32 to vector<2x128xf32>
      %285 = arith.addf %284, %283 : vector<2x128xf32>
      %286 = arith.divf %284, %285 : vector<2x128xf32>
      %287 = vector.extract_strided_slice %274 {offsets = [0, 128], sizes = [2, 128], strides = [1, 1]} : vector<2x384xf32> to vector<2x128xf32>
      %288 = vector.extract_strided_slice %278 {offsets = [0, 128], sizes = [2, 128], strides = [1, 1]} : vector<2x384xf32> to vector<2x128xf32>
      %289 = arith.addf %287, %288 : vector<2x128xf32>
      %290 = arith.negf %289 : vector<2x128xf32>
      %291 = math.exp %290 : vector<2x128xf32>
      %cst_73 = arith.constant 1.000000e+00 : f32
      %292 = vector.broadcast %cst_73 : f32 to vector<2x128xf32>
      %293 = arith.addf %292, %291 : vector<2x128xf32>
      %294 = arith.divf %292, %293 : vector<2x128xf32>
      %295 = vector.extract_strided_slice %274 {offsets = [0, 256], sizes = [2, 128], strides = [1, 1]} : vector<2x384xf32> to vector<2x128xf32>
      %296 = vector.broadcast %25 : vector<1x128xf32> to vector<2x128xf32>
      %297 = arith.addf %295, %296 : vector<2x128xf32>
      %298 = vector.extract_strided_slice %278 {offsets = [0, 256], sizes = [2, 128], strides = [1, 1]} : vector<2x384xf32> to vector<2x128xf32>
      %299 = arith.mulf %286, %298 : vector<2x128xf32>
      %300 = arith.addf %297, %299 : vector<2x128xf32>
      %301 = math.tanh %300 : vector<2x128xf32>
      %cst_74 = arith.constant 1.000000e+00 : f32
      %302 = vector.broadcast %cst_74 : f32 to vector<2x128xf32>
      %303 = arith.subf %302, %294 : vector<2x128xf32>
      %304 = arith.mulf %303, %301 : vector<2x128xf32>
      %305 = arith.mulf %294, %271 : vector<2x128xf32>
      %306 = arith.addf %304, %305 : vector<2x128xf32>
      %c0_75 = arith.constant 0 : index
      %c0_76 = arith.constant 0 : index
      %307 = vector.load %arg9[%c0_75, %c0_76] : memref<2x128xf32, #tpu.memory_space<vmem>>, vector<2x128xf32>
      tpu.vector_store %arg9[%c0_75, %c0_76], %306 {strides = array<i32>} : memref<2x128xf32, #tpu.memory_space<vmem>>, vector<2x128xf32>,
    } else {
    }
    %c1_i32_4 = arith.constant 1 : i32
    %9 = arith.cmpi eq, %arg0, %c1_i32_4 : i32
    %10 = arith.extui %9 : i1 to i32
    %c0_i32_5 = arith.constant 0 : i32
    %11 = arith.cmpi ne, %10, %c0_i32_5 : i32
    scf.if %11 {
      %c0 = arith.constant 0 : index
      %c0_6 = arith.constant 0 : index
      %12 = vector.load %arg9[%c0, %c0_6] : memref<2x128xf32, #tpu.memory_space<vmem>>, vector<2x128xf32>
      %13 = arith.truncf %12 : vector<2x128xf32> to vector<2x128xbf16>
      %c0_7 = arith.constant 0 : index
      %c0_8 = arith.constant 0 : index
      %14 = vector.load %arg6[%c0_7, %c0_8] : memref<128x128xbf16, #tpu.memory_space<vmem>>, vector<128x128xbf16>
      %cst = arith.constant dense<0.000000e+00> : vector<2x128xf32>
      %15 = tpu.matmul %13, %14, %cst {dimension_numbers = #tpu.dot_dimension_numbers<[1], [0], [0], [1], [0, 0, 1, 1], [], []>} : vector<2x128xbf16>, vector<128x128xbf16>, vector<2x128xf32> -> vector<2x128xf32>
      %c0_9 = arith.constant 0 : index
      %c0_10 = arith.constant 0 : index
      %16 = vector.load %arg7[%c0_9, %c0_10] : memref<1x128xf32, #tpu.memory_space<vmem>>, vector<1x128xf32>
      %17 = vector.broadcast %16 : vector<1x128xf32> to vector<2x128xf32>
      %18 = arith.addf %15, %17 : vector<2x128xf32>
      %cst_11 = arith.constant dense<0xFF800000> : vector<2xf32>
      %19 = vector.multi_reduction <maximumf>, %18, %cst_11 [1] : vector<2x128xf32> to vector<2xf32>
      %20 = vector.shape_cast %19 : vector<2xf32> to vector<2x1xf32>
      %21 = vector.broadcast %20 : vector<2x1xf32> to vector<2x128xf32>
      %22 = arith.subf %18, %21 : vector<2x128xf32>
      %23 = math.exp %22 : vector<2x128xf32>
      %cst_12 = arith.constant dense<0.000000e+00> : vector<2xf32>
      %24 = vector.multi_reduction <add>, %23, %cst_12 [1] : vector<2x128xf32> to vector<2xf32>
      %25 = vector.shape_cast %24 : vector<2xf32> to vector<2x1xf32>
      %26 = math.log %25 : vector<2x1xf32>
      %27 = arith.addf %26, %20 : vector<2x1xf32>
      %28 = vector.broadcast %27 : vector<2x1xf32> to vector<2x128xf32>
      %29 = arith.subf %18, %28 : vector<2x128xf32>
      %c0_13 = arith.constant 0 : index
      %c0_14 = arith.constant 0 : index
      %30 = vector.load %arg8[%c0_13, %c0_14] : memref<2x128xf32, #tpu.memory_space<vmem>>, vector<2x128xf32>
      tpu.vector_store %arg8[%c0_13, %c0_14], %29 {strides = array<i32>} : memref<2x128xf32, #tpu.memory_space<vmem>>, vector<2x128xf32>,
    } else {
    }
    return
  }
  func.func @transform_0(%arg0: i32) -> (i32, i32) {
    %c0_i32 = arith.constant 0 : i32
    %0 = arith.minsi %arg0, %c0_i32 : i32
    %c0_i32_0 = arith.constant 0 : i32
    %c0_i32_1 = arith.constant 0 : i32
    return %0, %c0_i32_0 : i32, i32
  }
  func.func @transform_1(%arg0: i32) -> (i32, i32) {
    %c0_i32 = arith.constant 0 : i32
    %c0_i32_0 = arith.constant 0 : i32
    %c0_i32_1 = arith.constant 0 : i32
    return %c0_i32, %c0_i32_0 : i32, i32
  }
  func.func @transform_2(%arg0: i32) -> (i32, i32) {
    %c0_i32 = arith.constant 0 : i32
    %c0_i32_0 = arith.constant 0 : i32
    %c0_i32_1 = arith.constant 0 : i32
    return %c0_i32, %c0_i32_0 : i32, i32
  }
  func.func @transform_3(%arg0: i32) -> (i32, i32) {
    %c0_i32 = arith.constant 0 : i32
    %c0_i32_0 = arith.constant 0 : i32
    %c0_i32_1 = arith.constant 0 : i32
    return %c0_i32, %c0_i32_0 : i32, i32
  }
  func.func @transform_4(%arg0: i32) -> (i32, i32) {
    %c0_i32 = arith.constant 0 : i32
    %c0_i32_0 = arith.constant 0 : i32
    %c0_i32_1 = arith.constant 0 : i32
    return %c0_i32, %c0_i32_0 : i32, i32
  }
  func.func @transform_5(%arg0: i32) -> (i32, i32) {
    %c0_i32 = arith.constant 0 : i32
    %c0_i32_0 = arith.constant 0 : i32
    %c0_i32_1 = arith.constant 0 : i32
    return %c0_i32, %c0_i32_0 : i32, i32
  }
  func.func @transform_6(%arg0: i32) -> (i32, i32) {
    %c0_i32 = arith.constant 0 : i32
    %c0_i32_0 = arith.constant 0 : i32
    %c0_i32_1 = arith.constant 0 : i32
    return %c0_i32, %c0_i32_0 : i32, i32
  }
  func.func @transform_7(%arg0: i32) -> (i32, i32) {
    %c0_i32 = arith.constant 0 : i32
    %c0_i32_0 = arith.constant 0 : i32
    %c0_i32_1 = arith.constant 0 : i32
    return %c0_i32, %c0_i32_0 : i32, i32
  }
}

</mosaic_0001>

<llo_original>
// kernel: tpu_custom_call.1
$region0: #{tpu_custom_call.1}
  #allocation0 [shape = 'u32[]', space=smem, size = 0x4, offset = 0x4, fixed_abs, tag = 'smem constant byte address 0x4 - core index']
  #allocation1 [shape = 'u32[144,128]{1,0:T(1,128)}', space=vmem, size = 0x12000, scoped, tag = 'internal scratch']
  #allocation2 [shape = 'f32[2,128]{1,0:T(2,128)}', space=vmem, size = 0x400, scoped, tag = 'scratch operand']
  #allocation3 [shape = 'f32[2,16,384]{2,1,0:T(8,128)}', space=vmem, size = 0xc000, scoped, tag = 'scratch operand']
  %s0 = inlined_call_operand.hbm [shape: f32[16,32], index: 0, kind: input, shape index: {}]
  %s1 = inlined_call_operand.hbm [shape: bf16[32,384], index: 1, kind: input, shape index: {}]
  %s2 = inlined_call_operand.hbm [shape: bf16[128,384], index: 2, kind: input, shape index: {}]
  %s3 = inlined_call_operand.vmem [shape: f32[1,384], index: 3, kind: input, shape index: {}]
  %s4 = inlined_call_operand.vmem [shape: f32[1,128], index: 4, kind: input, shape index: {}]
  %s5 = inlined_call_operand.hbm [shape: bf16[128,128], index: 5, kind: input, shape index: {}]
  %s6 = inlined_call_operand.vmem [shape: f32[1,128], index: 6, kind: input, shape index: {}]
  %s7 = inlined_call_operand.hbm [shape: f32[2,128], index: 7, kind: output, shape index: {}]
  %s8 = sld [smem:[#allocation0]]
  $region93: #{tpu_custom_call.1} parent=0
    _
  %s10 = ssub.s32 1, %s8
  %s11 = scalar_select 0, %s10, %s8
  $region1: #{tpu_custom_call.1} parent=0
    #allocation4 [shape = 'u8[16384]{0}', space=vmem, size = 0x4000, scoped, tag = 'input window, operand 0']
    #allocation5 [shape = 's32[2]{0}', space=sflag, size = 0x8, scoped, tag = 'scoped memory for tpu_custom_call.1']
    #allocation6 [shape = 's32[2]{0}', space=sflag, size = 0x8, scoped, tag = 'scoped memory for tpu_custom_call.1']
    #allocation7 [shape = 'u8[24576]{0}', space=vmem, size = 0x6000, scoped, tag = 'input window, operand 1, single buffered']
    #allocation8 [shape = 's32[1]{0}', space=sflag, size = 0x4, scoped, tag = 'scoped memory for tpu_custom_call.1']
    #allocation9 [shape = 'u8[98304]{0}', space=vmem, size = 0x18000, scoped, tag = 'input window, operand 2, single buffered']
    #allocation10 [shape = 'u8[32768]{0}', space=vmem, size = 0x8000, scoped, tag = 'input window, operand 5, single buffered']
    #allocation11 [shape = 's32[1]{0}', space=sflag, size = 0x4, scoped, tag = 'scoped memory for tpu_custom_call.1']
    #allocation12 [shape = 'u8[1024]{0}', space=vmem, size = 0x400, scoped, tag = 'output window, operand 0, single buffered']
    %12 = vsyncpa [#allocation5], 0
    %s13 = scalar_lea.sflag [#allocation5], 1
    %14 = vsyncpa %s13, 0
    %15 = vsyncpa [#allocation8], 0
    %16 = vsyncpa [#allocation11], 0
    %17 = vsyncpa [#allocation6], 0
    loop: start=0, step=1, limit=4
    $region2: #{tpu_custom_call.1} parent=1 // loop_pre_header
      _
    $region3: #{tpu_custom_call.1} parent=1 // loop_header
      %s19 = sphi 0, %s23
      %p20 = scmp.ge.s32.totalorder %s19, 4
      %s33 = sphi 0, %s35
      %s36 = sphi 0, %s33
      %s37 = sphi 0, %s36
      %s53 = sphi 0, %s37
      %s57 = sphi 0, %s57
      %s59 = sphi 0, %s57
      %s60 = sphi 0, %s59
      %s74 = sphi 0, %s60
      %s78 = sphi 0, %s78
      %s80 = sphi 0, %s78
      %s81 = sphi 0, %s80
      %s95 = sphi 0, %s81
      %s99 = sphi 0, %s99
      %s101 = sphi 0, %s99
      %s102 = sphi 0, %s101
      %s116 = sphi 0, %s102
      %s120 = sphi 0, %s120
      %s122 = sphi 0, %s120
      %s123 = sphi 0, %s122
      %s137 = sphi 0, %s123
      %s141 = sphi 0, %s141
      %s143 = sphi 0, %s141
      %s144 = sphi 0, %s143
      %s158 = sphi 0, %s144
      %s162 = sphi 0, %s162
      %s164 = sphi 0, %s162
      %s165 = sphi 0, %s164
      %s179 = sphi 0, %s165
      %s183 = sphi 0, %s183
      %s185 = sphi 0, %s183
      %s186 = sphi 0, %s185
      %s200 = sphi 0, %s186
    $region4: #{tpu_custom_call.1} parent=1 // loop_header_branch
      %22 = sbr.rel (%p20) target = $region8
    $region5: #{tpu_custom_call.1} parent=1 // loop_body
      %s24 = ssub.s32 %s19, 1
      %s25 = ssub.s32 %s19, 2
      %s26 = sadd.s32 %s19, 1
      %p27 = scmp.lt.s32.totalorder %s19, 0
      %s28 = scalar_select %p27, %s19, 0
      %p29 = scmp.lt.s32.totalorder %s26, 0
      %s30 = scalar_select %p29, %s26, 0
      %s31 = ssub.s32 %s28, %s30
      %p32 = scmp.eq.s32.totalorder %s31, 0
      %s34 = sadd.s32 %s33, 1
      %s35 = scalar_select %p32, %s33, %s34
      %p38 = pneg %p32
      %p39 = scmp.eq.s32.totalorder %s19, 1
      %p40 = por %p38, %p39
      %p41 = scmp.ne.s32.totalorder %s33, %s36
      %p42 = scmp.eq.s32.totalorder %s19, 0
      %p43 = por %p41, %p42
      %p44 = scmp.ne.s32.totalorder %s33, %s36
      %p45 = scmp.eq.s32.totalorder %s24, 1
      %p46 = por %p44, %p45
      %p47 = scmp.ne.s32.totalorder %s36, %s37
      %p48 = scmp.eq.s32.totalorder %s24, 0
      %p49 = por %p47, %p48
      %p50 = scmp.ne.s32.totalorder %s36, %s37
      %p51 = scmp.eq.s32.totalorder %s25, 1
      %p52 = por %p50, %p51
      %p54 = scmp.ne.s32.totalorder %s37, %s53
      %p55 = scmp.eq.s32.totalorder %s25, 0
      %p56 = por %p54, %p55
      %s58 = sadd.s32 %s57, 1
      %p61 = scmp.eq.s32.totalorder %s19, 1
      %p62 = scmp.ne.s32.totalorder %s57, %s59
      %p63 = scmp.eq.s32.totalorder %s19, 0
      %p64 = por %p62, %p63
      %p65 = scmp.ne.s32.totalorder %s57, %s59
      %p66 = scmp.eq.s32.totalorder %s24, 1
      %p67 = por %p65, %p66
      %p68 = scmp.ne.s32.totalorder %s59, %s60
      %p69 = scmp.eq.s32.totalorder %s24, 0
      %p70 = por %p68, %p69
      %p71 = scmp.ne.s32.totalorder %s59, %s60
      %p72 = scmp.eq.s32.totalorder %s25, 1
      %p73 = por %p71, %p72
      %p75 = scmp.ne.s32.totalorder %s60, %s74
      %p76 = scmp.eq.s32.totalorder %s25, 0
      %p77 = por %p75, %p76
      %s79 = sadd.s32 %s78, 1
      %p82 = scmp.eq.s32.totalorder %s19, 1
      %p83 = scmp.ne.s32.totalorder %s78, %s80
      %p84 = scmp.eq.s32.totalorder %s19, 0
      %p85 = por %p83, %p84
      %p86 = scmp.ne.s32.totalorder %s78, %s80
      %p87 = scmp.eq.s32.totalorder %s24, 1
      %p88 = por %p86, %p87
      %p89 = scmp.ne.s32.totalorder %s80, %s81
      %p90 = scmp.eq.s32.totalorder %s24, 0
      %p91 = por %p89, %p90
      %p92 = scmp.ne.s32.totalorder %s80, %s81
      %p93 = scmp.eq.s32.totalorder %s25, 1
      %p94 = por %p92, %p93
      %p96 = scmp.ne.s32.totalorder %s81, %s95
      %p97 = scmp.eq.s32.totalorder %s25, 0
      %p98 = por %p96, %p97
      %s100 = sadd.s32 %s99, 1
      %p103 = scmp.eq.s32.totalorder %s19, 1
      %p104 = scmp.ne.s32.totalorder %s99, %s101
      %p105 = scmp.eq.s32.totalorder %s19, 0
      %p106 = por %p104, %p105
      %p107 = scmp.ne.s32.totalorder %s99, %s101
      %p108 = scmp.eq.s32.totalorder %s24, 1
      %p109 = por %p107, %p108
      %p110 = scmp.ne.s32.totalorder %s101, %s102
      %p111 = scmp.eq.s32.totalorder %s24, 0
      %p112 = por %p110, %p111
      %p113 = scmp.ne.s32.totalorder %s101, %s102
      %p114 = scmp.eq.s32.totalorder %s25, 1
      %p115 = por %p113, %p114
      %p117 = scmp.ne.s32.totalorder %s102, %s116
      %p118 = scmp.eq.s32.totalorder %s25, 0
      %p119 = por %p117, %p118
      %s121 = sadd.s32 %s120, 1
      %p124 = scmp.eq.s32.totalorder %s19, 1
      %p125 = scmp.ne.s32.totalorder %s120, %s122
      %p126 = scmp.eq.s32.totalorder %s19, 0
      %p127 = por %p125, %p126
      %p128 = scmp.ne.s32.totalorder %s120, %s122
      %p129 = scmp.eq.s32.totalorder %s24, 1
      %p130 = por %p128, %p129
      %p131 = scmp.ne.s32.totalorder %s122, %s123
      %p132 = scmp.eq.s32.totalorder %s24, 0
      %p133 = por %p131, %p132
      %p134 = scmp.ne.s32.totalorder %s122, %s123
      %p135 = scmp.eq.s32.totalorder %s25, 1
      %p136 = por %p134, %p135
      %p138 = scmp.ne.s32.totalorder %s123, %s137
      %p139 = scmp.eq.s32.totalorder %s25, 0
      %p140 = por %p138, %p139
      %s142 = sadd.s32 %s141, 1
      %p145 = scmp.eq.s32.totalorder %s19, 1
      %p146 = scmp.ne.s32.totalorder %s141, %s143
      %p147 = scmp.eq.s32.totalorder %s19, 0
      %p148 = por %p146, %p147
      %p149 = scmp.ne.s32.totalorder %s141, %s143
      %p150 = scmp.eq.s32.totalorder %s24, 1
      %p151 = por %p149, %p150
      %p152 = scmp.ne.s32.totalorder %s143, %s144
      %p153 = scmp.eq.s32.totalorder %s24, 0
      %p154 = por %p152, %p153
      %p155 = scmp.ne.s32.totalorder %s143, %s144
      %p156 = scmp.eq.s32.totalorder %s25, 1
      %p157 = por %p155, %p156
      %p159 = scmp.ne.s32.totalorder %s144, %s158
      %p160 = scmp.eq.s32.totalorder %s25, 0
      %p161 = por %p159, %p160
      %s163 = sadd.s32 %s162, 1
      %p166 = scmp.eq.s32.totalorder %s19, 1
      %p167 = scmp.ne.s32.totalorder %s162, %s164
      %p168 = scmp.eq.s32.totalorder %s19, 0
      %p169 = por %p167, %p168
      %p170 = scmp.ne.s32.totalorder %s162, %s164
      %p171 = scmp.eq.s32.totalorder %s24, 1
      %p172 = por %p170, %p171
      %p173 = scmp.ne.s32.totalorder %s164, %s165
      %p174 = scmp.eq.s32.totalorder %s24, 0
      %p175 = por %p173, %p174
      %p176 = scmp.ne.s32.totalorder %s164, %s165
      %p177 = scmp.eq.s32.totalorder %s25, 1
      %p178 = por %p176, %p177
      %p180 = scmp.ne.s32.totalorder %s165, %s179
      %p181 = scmp.eq.s32.totalorder %s25, 0
      %p182 = por %p180, %p181
      %s184 = sadd.s32 %s183, 1
      %p187 = scmp.eq.s32.totalorder %s19, 1
      %p188 = scmp.ne.s32.totalorder %s183, %s185
      %p189 = scmp.eq.s32.totalorder %s19, 0
      %p190 = por %p188, %p189
      %p191 = scmp.ne.s32.totalorder %s183, %s185
      %p192 = scmp.eq.s32.totalorder %s24, 1
      %p193 = por %p191, %p192
      %p194 = scmp.ne.s32.totalorder %s185, %s186
      %p195 = scmp.eq.s32.totalorder %s24, 0
      %p196 = por %p194, %p195
      %p197 = scmp.ne.s32.totalorder %s185, %s186
      %p198 = scmp.eq.s32.totalorder %s25, 1
      %p199 = por %p197, %p198
      %p201 = scmp.ne.s32.totalorder %s186, %s200
      %p202 = scmp.eq.s32.totalorder %s25, 0
      %p203 = por %p201, %p202
      %p204 = scmp.le.s32.totalorder 1, %s19
      %p205 = scmp.lt.s32.totalorder %s19, 3
      %p206 = pnand %p204, %p205
      %p207 = pneg %p206
      // Predicated region
      $region9: #{tpu_custom_call.1} parent=5 // pred_check
        _
      $region10: #{tpu_custom_call.1} parent=5 // pred_check_branch
        %209 = sbr.rel (%p206) target = $region12
      $region11: #{tpu_custom_call.1} parent=5 // pred_region
        %s210 = ssub.s32 %s19, 1
        // Predicated region
        $region13: #{tpu_custom_call.1} parent=11 // pred_check
          %p211 = pneg %p70
        $region14: #{tpu_custom_call.1} parent=11 // pred_check_branch
          %213 = sbr.rel (%p211) target = $region16
        $region15: #{tpu_custom_call.1} parent=11 // pred_region
          %s215 = ssub.s32 768, 768
          %216 = vsyncadd [#allocation8], %s215
          %s217 = sshll.u32 [#allocation7], 4
          %s218 = int_to_ptr.vmem [resolvable:$true] %s217
          %223 = dma.hbm_to_vmem [thread:$0]  %s1, 768, %s218, [#allocation8], 192, 192, 12
        $region16: #{tpu_custom_call.1} parent=11 // pred_fallthru
          _
        // Predicated region
        $region17: #{tpu_custom_call.1} parent=11 // pred_check
          %p224 = pneg %p91
        $region18: #{tpu_custom_call.1} parent=11 // pred_check_branch
          %226 = sbr.rel (%p224) target = $region20
        $region19: #{tpu_custom_call.1} parent=11 // pred_region
          %s228 = ssub.s32 3072, 3072
          %229 = vsyncadd [#allocation8], %s228
          %s230 = sshll.u32 [#allocation9], 4
          %s231 = int_to_ptr.vmem [resolvable:$true] %s230
          %236 = dma.hbm_to_vmem [thread:$0]  %s2, 3072, %s231, [#allocation8], 192, 192, 12
        $region20: #{tpu_custom_call.1} parent=11 // pred_fallthru
          _
        // Predicated region
        $region21: #{tpu_custom_call.1} parent=11 // pred_check
          %p237 = pneg %p112
        $region22: #{tpu_custom_call.1} parent=11 // pred_check_branch
          %239 = sbr.rel (%p237) target = $region24
        $region23: #{tpu_custom_call.1} parent=11 // pred_region
          _
        $region24: #{tpu_custom_call.1} parent=11 // pred_fallthru
          _
        // Predicated region
        $region25: #{tpu_custom_call.1} parent=11 // pred_check
          %p240 = pneg %p133
        $region26: #{tpu_custom_call.1} parent=11 // pred_check_branch
          %242 = sbr.rel (%p240) target = $region28
        $region27: #{tpu_custom_call.1} parent=11 // pred_region
          _
        $region28: #{tpu_custom_call.1} parent=11 // pred_fallthru
          _
        // Predicated region
        $region29: #{tpu_custom_call.1} parent=11 // pred_check
          %p243 = pneg %p154
        $region30: #{tpu_custom_call.1} parent=11 // pred_check_branch
          %245 = sbr.rel (%p243) target = $region32
        $region31: #{tpu_custom_call.1} parent=11 // pred_region
          %s247 = ssub.s32 1024, 1024
          %248 = vsyncadd [#allocation11], %s247
          %s249 = sshll.u32 [#allocation10], 4
          %s250 = int_to_ptr.vmem [resolvable:$true] %s249
          %255 = dma.hbm_to_vmem [thread:$0]  %s5, 1024, %s250, [#allocation11], 64, 64, 4
        $region32: #{tpu_custom_call.1} parent=11 // pred_fallthru
          _
        // Predicated region
        $region33: #{tpu_custom_call.1} parent=11 // pred_check
          %p256 = pneg %p175
        $region34: #{tpu_custom_call.1} parent=11 // pred_check_branch
          %258 = sbr.rel (%p256) target = $region36
        $region35: #{tpu_custom_call.1} parent=11 // pred_region
          _
        $region36: #{tpu_custom_call.1} parent=11 // pred_fallthru
          _
      $region12: #{tpu_custom_call.1} parent=5 // pred_fallthru
        _
      %p259 = scmp.lt.s32.totalorder %s19, 2
      // Predicated region
      $region37: #{tpu_custom_call.1} parent=5 // pred_check
        %p260 = pneg %p259
      $region38: #{tpu_custom_call.1} parent=5 // pred_check_branch
        %262 = sbr.rel (%p260) target = $region40
      $region39: #{tpu_custom_call.1} parent=5 // pred_region
        // Predicated region
        $region41: #{tpu_custom_call.1} parent=39 // pred_check
          %p263 = pneg %p43
        $region42: #{tpu_custom_call.1} parent=39 // pred_check_branch
          %265 = sbr.rel (%p263) target = $region44
        $region43: #{tpu_custom_call.1} parent=39 // pred_region
          %s266 = sand.u32 %s33, 1
          %s267 = scalar_lea.sflag [#allocation5], %s266
          %s268 = sand.u32 %s33, 1
          %s269 = smul.addr %s268, 16
          %s270 = scalar_lea.vmem [#allocation4], %s269
          %p271 = scmp.lt.s32.totalorder %s19, 0
          %s272 = scalar_select %p271, %s19, 0
          %s273 = smul.u32 2, %s272
          %s275 = ssub.s32 256, 256
          %276 = vsyncadd %s267, %s275
          %s277 = smul.addr %s273, 128
          %s278 = scalar_lea.hbm %s0, %s277
          %s279 = sshll.u32 %s270, 4
          %s280 = int_to_ptr.vmem [resolvable:$true] %s279
          %285 = dma.hbm_to_vmem [thread:$0]  %s278, 256, %s280, %s267, 128, 128, 8
        $region44: #{tpu_custom_call.1} parent=39 // pred_fallthru
          _
      $region40: #{tpu_custom_call.1} parent=5 // pred_fallthru
        _
      %p286 = scmp.le.s32.totalorder 1, %s19
      %p287 = scmp.lt.s32.totalorder %s19, 3
      %p288 = pnand %p286, %p287
      %p289 = pneg %p288
      // Predicated region
      $region45: #{tpu_custom_call.1} parent=5 // pred_check
        _
      $region46: #{tpu_custom_call.1} parent=5 // pred_check_branch
        %291 = sbr.rel (%p288) target = $region48
      $region47: #{tpu_custom_call.1} parent=5 // pred_region
        %s292 = ssub.s32 %s19, 1
        %s293 = sand.u32 %s36, 1
        %s294 = scalar_lea.sflag [#allocation5], %s293
        %s295 = sand.u32 %s36, 1
        %s296 = smul.addr %s295, 16
        %s297 = scalar_lea.vmem [#allocation4], %s296
        // Predicated region
        $region49: #{tpu_custom_call.1} parent=47 // pred_check
          %p298 = pneg %p49
        $region50: #{tpu_custom_call.1} parent=47 // pred_check_branch
          %300 = sbr.rel (%p298) target = $region52
        $region51: #{tpu_custom_call.1} parent=47 // pred_region
          %301 = dma.done %s294, 256
        $region52: #{tpu_custom_call.1} parent=47 // pred_fallthru
          _
        // Predicated region
        $region53: #{tpu_custom_call.1} parent=47 // pred_check
          %p302 = pneg %p70
        $region54: #{tpu_custom_call.1} parent=47 // pred_check_branch
          %304 = sbr.rel (%p302) target = $region56
        $region55: #{tpu_custom_call.1} parent=47 // pred_region
          %305 = dma.done [#allocation8], 768
        $region56: #{tpu_custom_call.1} parent=47 // pred_fallthru
          _
        // Predicated region
        $region57: #{tpu_custom_call.1} parent=47 // pred_check
          %p306 = pneg %p91
        $region58: #{tpu_custom_call.1} parent=47 // pred_check_branch
          %308 = sbr.rel (%p306) target = $region60
        $region59: #{tpu_custom_call.1} parent=47 // pred_region
          %309 = dma.done [#allocation8], 3072
        $region60: #{tpu_custom_call.1} parent=47 // pred_fallthru
          _
        // Predicated region
        $region61: #{tpu_custom_call.1} parent=47 // pred_check
          %p310 = pneg %p154
        $region62: #{tpu_custom_call.1} parent=47 // pred_check_branch
          %312 = sbr.rel (%p310) target = $region64
        $region63: #{tpu_custom_call.1} parent=47 // pred_region
          %313 = dma.done [#allocation11], 1024
        $region64: #{tpu_custom_call.1} parent=47 // pred_fallthru
          _
        %s314 = sand.u32 %s36, 1
        %s315 = scalar_lea.sflag [#allocation5], %s314
        %s316 = sand.u32 %s36, 1
        %s317 = smul.addr %s316, 16
        %s318 = scalar_lea.vmem [#allocation4], %s317
        %p319 = pneg %p49
        %p320 = pneg %p46
        %p321 = pneg %p70
        %p322 = pneg %p67
        %p323 = pneg %p91
        %p324 = pneg %p88
        %p325 = pneg %p112
        %p326 = pneg %p109
        %p327 = pneg %p133
        %p328 = pneg %p130
        %p329 = pneg %p154
        %p330 = pneg %p151
        %p331 = pneg %p175
        %p332 = pneg %p172
        %p333 = pneg %p196
        %p334 = pneg %p193
        %p335 = scmp.lt.s32.totalorder %s24, 0
        %s336 = scalar_select %p335, %s24, 0
        %s337 = smul.u32 2, %s336
        %p339 = scmp.eq.s32.totalorder %s24, 0
        // Predicated region
        $region65: #{tpu_custom_call.1} parent=47 // pred_check
          %p340 = pneg %p339
        $region66: #{tpu_custom_call.1} parent=47 // pred_check_branch
          %342 = sbr.rel (%p340) target = $region68
        $region67: #{tpu_custom_call.1} parent=47 // pred_region
          %343 = vst [vmem:[#allocation2] sm:$0x3] 0.0
        $region68: #{tpu_custom_call.1} parent=47 // pred_fallthru
          _
        %p344 = scmp.lt.s32.totalorder %s24, 1
        // Predicated region
        $region69: #{tpu_custom_call.1} parent=47 // pred_check
          %p345 = pneg %p344
        $region70: #{tpu_custom_call.1} parent=47 // pred_check_branch
          %347 = sbr.rel (%p345) target = $region72
        $region71: #{tpu_custom_call.1} parent=47 // pred_region
          %v348 = vld [vmem:[%s297] sm:$0xff]
          %v349 = vld [vmem:[%s297 + $0x8] sm:$0xff]
          %v350 = vpack.c.bf16 %v349, %v348
          %v351 = vld [vmem:[#allocation7] sm:$0xff]
          %v352 = vld [vmem:[#allocation7 + $0x8] sm:$0xf]
          %v353 = vld [vmem:[#allocation7 + $0xc] sm:$0xff]
          %v354 = vld [vmem:[#allocation7 + $0x14] sm:$0xf]
          %v355 = vld [vmem:[#allocation7 + $0x18] sm:$0xff]
          %v356 = vld [vmem:[#allocation7 + $0x20] sm:$0xf]
          %v357 = vld [vmem:[#allocation7 + $0x24] sm:$0xff]
          %v358 = vld [vmem:[#allocation7 + $0x2c] sm:$0xf]
          %v367 = vunpack.c.l.b16 %v351
          %v368 = vunpack.c.h.b16 %v351
          %v369 = vunpack.c.l.b16 %v352
          %v370 = vunpack.c.l.b16 %v353
          %v371 = vunpack.c.h.b16 %v353
          %v372 = vunpack.c.l.b16 %v354
          %v373 = vunpack.c.l.b16 %v355
          %v374 = vunpack.c.h.b16 %v355
          %v375 = vunpack.c.l.b16 %v356
          %v376 = vunpack.c.l.b16 %v357
          %v377 = vunpack.c.h.b16 %v357
          %v378 = vunpack.c.l.b16 %v358
          %v379 = vpack.c.b16 %v370, %v367
          %v380 = vpack.c.b16 %v371, %v368
          %v381 = vpack.c.b16 %v372, %v369
          %v382 = vpack.c.b16 %v376, %v373
          %v383 = vpack.c.b16 %v377, %v374
          %v384 = vpack.c.b16 %v378, %v375
          %vm391 = vcmask 261120
          %v393 = vsel %vm391, %v350, 0
          %395 = vmatprep.subr.bf16.mxu0 %v380
          %396 = vmatpush1.bf16.msra.mxu0 %v379
          %397 = vmatprep.subr.bf16.mxu0 %v383
          %398 = vmatpush1.bf16.msra.mxu0 %v382
          %399 = vmatprep.subr.bf16.mxu0 0
          %400 = vmatpush1.bf16.msra.mxu0 0
          %401 = vmatprep.subr.bf16.mxu0 0
          %402 = vmatpush1.bf16.msra.mxu0 0
          %403 = vmatprep.subr.bf16.mxu0 0
          %404 = vmatpush1.bf16.msra.mxu0 0
          %405 = vmatprep.subr.bf16.mxu0 0
          %406 = vmatpush1.bf16.msra.mxu0 0
          %407 = vmatprep.subr.bf16.mxu0 0
          %408 = vmatpush1.bf16.msra.mxu0 0
          %409 = vmatprep.subr.bf16.mxu0 0
          %410 = vmatpush1.bf16.msra.mxu0 0
          %411 = vmatprep.subr.bf16.mxu0 0
          %412 = vmatpush1.bf16.msra.mxu0 0
          %413 = vmatprep.subr.bf16.mxu0 0
          %414 = vmatpush1.bf16.msra.mxu0 0
          %415 = vmatprep.subr.bf16.mxu0 0
          %416 = vmatpush1.bf16.msra.mxu0 0
          %417 = vmatprep.subr.bf16.mxu0 0
          %418 = vmatpush1.bf16.msra.mxu0 0
          %419 = vmatprep.subr.bf16.mxu0 0
          %420 = vmatpush1.bf16.msra.mxu0 0
          %421 = vmatprep.subr.bf16.mxu0 0
          %422 = vmatpush1.bf16.msra.mxu0 0
          %423 = vmatprep.subr.bf16.mxu0 0
          %424 = vmatpush1.bf16.msra.mxu0 0
          %425 = vmatprep.subr.bf16.mxu0 0
          %426 = vmatpush1.bf16.msra.mxu0 0
          %427 = vmatprep.mubr.bf16.mxu0 0
          %428 = vmatmul.mubr.bf16.gmra.mrb[0].mxu0 %v393
          %v429 = vpop.f32.mrb[0].mxu0
          %v430 = vadd.f32 0.0, %v429
          %v431 = vpop.f32.mrb[0].mxu0
          %v432 = vadd.f32 0.0, %v431
          %v433 = vpop.f32.mrb[0].mxu0
          %v434 = vadd.f32 0.0, %v433
          %v435 = vpop.f32.mrb[0].mxu0
          %v436 = vadd.f32 0.0, %v435
          %437 = vdwg.mxu0
          %438 = vmatprep.subr.bf16.mxu0 0
          %439 = vmatpush1.bf16.msra.mxu0 %v381
          %440 = vmatprep.subr.bf16.mxu0 0
          %441 = vmatpush1.bf16.msra.mxu0 %v384
          %442 = vmatprep.subr.bf16.mxu0 0
          %443 = vmatpush1.bf16.msra.mxu0 0
          %444 = vmatprep.subr.bf16.mxu0 0
          %445 = vmatpush1.bf16.msra.mxu0 0
          %446 = vmatprep.subr.bf16.mxu0 0
          %447 = vmatpush1.bf16.msra.mxu0 0
          %448 = vmatprep.subr.bf16.mxu0 0
          %449 = vmatpush1.bf16.msra.mxu0 0
          %450 = vmatprep.subr.bf16.mxu0 0
          %451 = vmatpush1.bf16.msra.mxu0 0
          %452 = vmatprep.subr.bf16.mxu0 0
          %453 = vmatpush1.bf16.msra.mxu0 0
          %454 = vmatprep.subr.bf16.mxu0 0
          %455 = vmatpush1.bf16.msra.mxu0 0
          %456 = vmatprep.subr.bf16.mxu0 0
          %457 = vmatpush1.bf16.msra.mxu0 0
          %458 = vmatprep.subr.bf16.mxu0 0
          %459 = vmatpush1.bf16.msra.mxu0 0
          %460 = vmatprep.subr.bf16.mxu0 0
          %461 = vmatpush1.bf16.msra.mxu0 0
          %462 = vmatprep.subr.bf16.mxu0 0
          %463 = vmatpush1.bf16.msra.mxu0 0
          %464 = vmatprep.subr.bf16.mxu0 0
          %465 = vmatpush1.bf16.msra.mxu0 0
          %466 = vmatprep.subr.bf16.mxu0 0
          %467 = vmatpush1.bf16.msra.mxu0 0
          %468 = vmatprep.subr.bf16.mxu0 0
          %469 = vmatpush1.bf16.msra.mxu0 0
          %470 = vmatprep.mubr.bf16.mxu0 0
          %471 = vmatmul.mubr.bf16.gmra.mrb[0].mxu0 %v393
          %v472 = vpop.f32.mrb[0].mxu0
          %v473 = vadd.f32 0.0, %v472
          %v474 = vpop.f32.mrb[0].mxu0
          %v475 = vpop.f32.mrb[0].mxu0
          %v476 = vadd.f32 0.0, %v475
          %v477 = vpop.f32.mrb[0].mxu0
          %478 = vdwg.mxu0
          %p479 = scmp.lt.s32.totalorder %s24, 0
          %s480 = ssub.s32 0, %s24
          %s481 = scalar_select %p479, %s480, %s24
          %s482 = sand.u32 %s481, 1
          %s483 = ssub.s32 0, %s482
          %s484 = scalar_select %p479, %s483, %s482
          %p485 = scmp.ne.s32.totalorder %s484, 0
          %p486 = scmp.lt.s32.totalorder %s484, 0
          %p487 = pnand %p486, %p485
          %p488 = pneg %p487
          %s489 = sadd.s32 %s484, 2
          %s490 = scalar_select %p488, %s489, %s484
          %s491 = smul.u32 %s490, 6
          %s492 = smul.addr %s491, 8
          %s493 = scalar_lea.vmem [#allocation3], %s492
          %494 = vst [vmem:[%s493] sm:$0xff] %v430
          %495 = vst [vmem:[%s493 + $0x8] sm:$0xff] %v432
          %496 = vst [vmem:[%s493 + $0x10] sm:$0xff] %v473
          %497 = vst [vmem:[%s493 + $0x18] sm:$0xff] %v434
          %498 = vst [vmem:[%s493 + $0x20] sm:$0xff] %v436
          %499 = vst [vmem:[%s493 + $0x28] sm:$0xff] %v476
        $region72: #{tpu_custom_call.1} parent=47 // pred_fallthru
          _
        %p500 = scmp.gt.s32.totalorder %s24, 0
        // Predicated region
        $region73: #{tpu_custom_call.1} parent=47 // pred_check
          %p501 = pneg %p500
        $region74: #{tpu_custom_call.1} parent=47 // pred_check_branch
          %503 = sbr.rel (%p501) target = $region76
        $region75: #{tpu_custom_call.1} parent=47 // pred_region
          %s504 = ssub.s32 %s24, 1
          %p505 = scmp.lt.s32.totalorder %s504, 0
          %s506 = ssub.s32 0, %s504
          %s507 = scalar_select %p505, %s506, %s504
          %s508 = sand.u32 %s507, 1
          %s509 = ssub.s32 0, %s508
          %s510 = scalar_select %p505, %s509, %s508
          %p511 = scmp.ne.s32.totalorder %s510, 0
          %p512 = scmp.lt.s32.totalorder %s510, 0
          %p513 = pnand %p512, %p511
          %p514 = pneg %p513
          %s515 = sadd.s32 %s510, 2
          %s516 = scalar_select %p514, %s515, %s510
          %v517 = vld [vmem:[#allocation9] sm:$0xff]
          %v518 = vld [vmem:[#allocation9 + $0x8] sm:$0xf]
          %v519 = vld [vmem:[#allocation9 + $0xc] sm:$0xff]
          %v520 = vld [vmem:[#allocation9 + $0x14] sm:$0xf]
          %v521 = vld [vmem:[#allocation9 + $0x18] sm:$0xff]
          %v522 = vld [vmem:[#allocation9 + $0x20] sm:$0xf]
          %v523 = vld [vmem:[#allocation9 + $0x24] sm:$0xff]
          %v524 = vld [vmem:[#allocation9 + $0x2c] sm:$0xf]
          %v525 = vld [vmem:[#allocation9 + $0x30] sm:$0xff]
          %v526 = vld [vmem:[#allocation9 + $0x38] sm:$0xf]
          %v527 = vld [vmem:[#allocation9 + $0x3c] sm:$0xff]
          %v528 = vld [vmem:[#allocation9 + $0x44] sm:$0xf]
          %v529 = vld [vmem:[#allocation9 + $0x48] sm:$0xff]
          %v530 = vld [vmem:[#allocation9 + $0x50] sm:$0xf]
          %v531 = vld [vmem:[#allocation9 + $0x54] sm:$0xff]
          %v532 = vld [vmem:[#allocation9 + $0x5c] sm:$0xf]
          %v533 = vld [vmem:[#allocation9 + $0x60] sm:$0xff]
          %v534 = vld [vmem:[#allocation9 + $0x68] sm:$0xf]
          %v535 = vld [vmem:[#allocation9 + $0x6c] sm:$0xff]
          %v536 = vld [vmem:[#allocation9 + $0x74] sm:$0xf]
          %v537 = vld [vmem:[#allocation9 + $0x78] sm:$0xff]
          %v538 = vld [vmem:[#allocation9 + $0x80] sm:$0xf]
          %v539 = vld [vmem:[#allocation9 + $0x84] sm:$0xff]
          %v540 = vld [vmem:[#allocation9 + $0x8c] sm:$0xf]
          %v541 = vld [vmem:[#allocation9 + $0x90] sm:$0xff]
          %v542 = vld [vmem:[#allocation9 + $0x98] sm:$0xf]
          %v543 = vld [vmem:[#allocation9 + $0x9c] sm:$0xff]
          %v544 = vld [vmem:[#allocation9 + $0xa4] sm:$0xf]
          %v545 = vld [vmem:[#allocation9 + $0xa8] sm:$0xff]
          %v546 = vld [vmem:[#allocation9 + $0xb0] sm:$0xf]
          %v547 = vld [vmem:[#allocation9 + $0xb4] sm:$0xff]
          %v548 = vld [vmem:[#allocation9 + $0xbc] sm:$0xf]
          %v549 = vld [vmem:[%s3] sm:$0x7]
          %v550 = vld [vmem:[%s4] sm:$0x1]
          %v551 = vld [vmem:[#allocation2] sm:$0x3]
          %s552 = smul.u32 %s516, 6
          %s553 = smul.addr %s552, 8
          %s554 = scalar_lea.vmem [#allocation3], %s553
          %v555 = vld [vmem:[%s554] sm:$0x3]
          %v556 = vld [vmem:[%s554 + $0x8] sm:$0x3]
          %v557 = vld [vmem:[%s554 + $0x10] sm:$0x3]
          %v558 = vpack.c.bf16 %v551, %v551
          %v560 = vlaneseq
          %v561 = vshrl.u32 %v560, 7
          %v562 = vsub.s32 0, %v561
          %v563 = vrot.slane %v549, %v562
          %v564 = vlaneseq
          %v565 = vshrl.u32 %v564, 7
          %v566 = vsub.s32 1, %v565
          %v567 = vrot.slane %v549, %v566
          %v568 = vlaneseq
          %v569 = vshrl.u32 %v568, 7
          %v570 = vsub.s32 2, %v569
          %v571 = vrot.slane %v549, %v570
          %v607 = vunpack.c.l.b16 %v517
          %v608 = vunpack.c.h.b16 %v517
          %v609 = vunpack.c.l.b16 %v518
          %v610 = vunpack.c.l.b16 %v519
          %v611 = vunpack.c.h.b16 %v519
          %v612 = vunpack.c.l.b16 %v520
          %v613 = vunpack.c.l.b16 %v521
          %v614 = vunpack.c.h.b16 %v521
          %v615 = vunpack.c.l.b16 %v522
          %v616 = vunpack.c.l.b16 %v523
          %v617 = vunpack.c.h.b16 %v523
          %v618 = vunpack.c.l.b16 %v524
          %v619 = vunpack.c.l.b16 %v525
          %v620 = vunpack.c.h.b16 %v525
          %v621 = vunpack.c.l.b16 %v526
          %v622 = vunpack.c.l.b16 %v527
          %v623 = vunpack.c.h.b16 %v527
          %v624 = vunpack.c.l.b16 %v528
          %v625 = vunpack.c.l.b16 %v529
          %v626 = vunpack.c.h.b16 %v529
          %v627 = vunpack.c.l.b16 %v530
          %v628 = vunpack.c.l.b16 %v531
          %v629 = vunpack.c.h.b16 %v531
          %v630 = vunpack.c.l.b16 %v532
          %v631 = vunpack.c.l.b16 %v533
          %v632 = vunpack.c.h.b16 %v533
          %v633 = vunpack.c.l.b16 %v534
          %v634 = vunpack.c.l.b16 %v535
          %v635 = vunpack.c.h.b16 %v535
          %v636 = vunpack.c.l.b16 %v536
          %v637 = vunpack.c.l.b16 %v537
          %v638 = vunpack.c.h.b16 %v537
          %v639 = vunpack.c.l.b16 %v538
          %v640 = vunpack.c.l.b16 %v539
          %v641 = vunpack.c.h.b16 %v539
          %v642 = vunpack.c.l.b16 %v540
          %v643 = vunpack.c.l.b16 %v541
          %v644 = vunpack.c.h.b16 %v541
          %v645 = vunpack.c.l.b16 %v542
          %v646 = vunpack.c.l.b16 %v543
          %v647 = vunpack.c.h.b16 %v543
          %v648 = vunpack.c.l.b16 %v544
          %v649 = vunpack.c.l.b16 %v545
          %v650 = vunpack.c.h.b16 %v545
          %v651 = vunpack.c.l.b16 %v546
          %v652 = vunpack.c.l.b16 %v547
          %v653 = vunpack.c.h.b16 %v547
          %v654 = vunpack.c.l.b16 %v548
          %v655 = vpack.c.b16 %v610, %v607
          %v656 = vpack.c.b16 %v611, %v608
          %v657 = vpack.c.b16 %v612, %v609
          %v658 = vpack.c.b16 %v616, %v613
          %v659 = vpack.c.b16 %v617, %v614
          %v660 = vpack.c.b16 %v618, %v615
          %v661 = vpack.c.b16 %v622, %v619
          %v662 = vpack.c.b16 %v623, %v620
          %v663 = vpack.c.b16 %v624, %v621
          %v664 = vpack.c.b16 %v628, %v625
          %v665 = vpack.c.b16 %v629, %v626
          %v666 = vpack.c.b16 %v630, %v627
          %v667 = vpack.c.b16 %v634, %v631
          %v668 = vpack.c.b16 %v635, %v632
          %v669 = vpack.c.b16 %v636, %v633
          %v670 = vpack.c.b16 %v640, %v637
          %v671 = vpack.c.b16 %v641, %v638
          %v672 = vpack.c.b16 %v642, %v639
          %v673 = vpack.c.b16 %v646, %v643
          %v674 = vpack.c.b16 %v647, %v644
          %v675 = vpack.c.b16 %v648, %v645
          %v676 = vpack.c.b16 %v652, %v649
          %v677 = vpack.c.b16 %v653, %v650
          %v678 = vpack.c.b16 %v654, %v651
          %703 = vmatprep.subr.bf16.mxu0 %v656
          %704 = vmatpush1.bf16.msra.mxu0 %v655
          %705 = vmatprep.subr.bf16.mxu0 %v659
          %706 = vmatpush1.bf16.msra.mxu0 %v658
          %707 = vmatprep.subr.bf16.mxu0 %v662
          %708 = vmatpush1.bf16.msra.mxu0 %v661
          %709 = vmatprep.subr.bf16.mxu0 %v665
          %710 = vmatpush1.bf16.msra.mxu0 %v664
          %711 = vmatprep.subr.bf16.mxu0 %v668
          %712 = vmatpush1.bf16.msra.mxu0 %v667
          %713 = vmatprep.subr.bf16.mxu0 %v671
          %714 = vmatpush1.bf16.msra.mxu0 %v670
          %715 = vmatprep.subr.bf16.mxu0 %v674
          %716 = vmatpush1.bf16.msra.mxu0 %v673
          %717 = vmatprep.subr.bf16.mxu0 %v677
          %718 = vmatpush1.bf16.msra.mxu0 %v676
          %719 = vmatprep.subr.bf16.mxu0 0
          %720 = vmatpush1.bf16.msra.mxu0 0
          %721 = vmatprep.subr.bf16.mxu0 0
          %722 = vmatpush1.bf16.msra.mxu0 0
          %723 = vmatprep.subr.bf16.mxu0 0
          %724 = vmatpush1.bf16.msra.mxu0 0
          %725 = vmatprep.subr.bf16.mxu0 0
          %726 = vmatpush1.bf16.msra.mxu0 0
          %727 = vmatprep.subr.bf16.mxu0 0
          %728 = vmatpush1.bf16.msra.mxu0 0
          %729 = vmatprep.subr.bf16.mxu0 0
          %730 = vmatpush1.bf16.msra.mxu0 0
          %731 = vmatprep.subr.bf16.mxu0 0
          %732 = vmatpush1.bf16.msra.mxu0 0
          %733 = vmatprep.subr.bf16.mxu0 0
          %734 = vmatpush1.bf16.msra.mxu0 0
          %735 = vmatprep.mubr.bf16.mxu0 0
          %736 = vmatmul.mubr.bf16.gmra.mrb[0].mxu0 %v558
          %v737 = vpop.f32.mrb[0].mxu0
          %v738 = vadd.f32 %v563, %v737
          %v739 = vpop.f32.mrb[0].mxu0
          %v740 = vadd.f32 %v567, %v739
          %v741 = vpop.f32.mrb[0].mxu0
          %v742 = vpop.f32.mrb[0].mxu0
          %743 = vdwg.mxu0
          %744 = vmatprep.subr.bf16.mxu0 0
          %745 = vmatpush1.bf16.msra.mxu0 %v657
          %746 = vmatprep.subr.bf16.mxu0 0
          %747 = vmatpush1.bf16.msra.mxu0 %v660
          %748 = vmatprep.subr.bf16.mxu0 0
          %749 = vmatpush1.bf16.msra.mxu0 %v663
          %750 = vmatprep.subr.bf16.mxu0 0
          %751 = vmatpush1.bf16.msra.mxu0 %v666
          %752 = vmatprep.subr.bf16.mxu0 0
          %753 = vmatpush1.bf16.msra.mxu0 %v669
          %754 = vmatprep.subr.bf16.mxu0 0
          %755 = vmatpush1.bf16.msra.mxu0 %v672
          %756 = vmatprep.subr.bf16.mxu0 0
          %757 = vmatpush1.bf16.msra.mxu0 %v675
          %758 = vmatprep.subr.bf16.mxu0 0
          %759 = vmatpush1.bf16.msra.mxu0 %v678
          %760 = vmatprep.subr.bf16.mxu0 0
          %761 = vmatpush1.bf16.msra.mxu0 0
          %762 = vmatprep.subr.bf16.mxu0 0
          %763 = vmatpush1.bf16.msra.mxu0 0
          %764 = vmatprep.subr.bf16.mxu0 0
          %765 = vmatpush1.bf16.msra.mxu0 0
          %766 = vmatprep.subr.bf16.mxu0 0
          %767 = vmatpush1.bf16.msra.mxu0 0
          %768 = vmatprep.subr.bf16.mxu0 0
          %769 = vmatpush1.bf16.msra.mxu0 0
          %770 = vmatprep.subr.bf16.mxu0 0
          %771 = vmatpush1.bf16.msra.mxu0 0
          %772 = vmatprep.subr.bf16.mxu0 0
          %773 = vmatpush1.bf16.msra.mxu0 0
          %774 = vmatprep.subr.bf16.mxu0 0
          %775 = vmatpush1.bf16.msra.mxu0 0
          %776 = vmatprep.mubr.bf16.mxu0 0
          %777 = vmatmul.mubr.bf16.gmra.mrb[0].mxu0 %v558
          %v778 = vpop.f32.mrb[0].mxu0
          %v779 = vadd.f32 %v571, %v778
          %v780 = vpop.f32.mrb[0].mxu0
          %v781 = vpop.f32.mrb[0].mxu0
          %v782 = vpop.f32.mrb[0].mxu0
          %783 = vdwg.mxu0
          %v784 = vadd.f32 %v555, %v738
          %v785 = vxor.u32 %v784, 2147483648
          %v786 = vmul.f32 %v785, 1.442695
          %v787 = vpow.pop %v786
          %v788 = vadd.f32 %v787, 1.0
          %v789 = vrcp.pop %v788
          %v790 = vmul.f32 1.0, %v789
          %v791 = vadd.f32 %v556, %v740
          %v792 = vxor.u32 %v791, 2147483648
          %v793 = vmul.f32 %v792, 1.442695
          %v794 = vpow.pop %v793
          %v795 = vadd.f32 %v794, 1.0
          %v796 = vrcp.pop %v795
          %v797 = vmul.f32 1.0, %v796
          %v799 = vlaneseq
          %v800 = vshrl.u32 %v799, 7
          %v801 = vsub.s32 0, %v800
          %v802 = vrot.slane %v550, %v801
          %v804 = vadd.f32 %v557, %v802
          %v805 = vmul.f32 %v790, %v779
          %v806 = vadd.f32 %v804, %v805
          %v807 = vtanh.pop %v806
          %v808 = vsub.f32 1.0, %v797
          %v809 = vmul.f32 %v808, %v807
          %v810 = vmul.f32 %v797, %v551
          %v811 = vadd.f32 %v809, %v810
          %v812 = vld [vmem:[%s554] sm:$0xc]
          %v813 = vld [vmem:[%s554 + $0x8] sm:$0xc]
          %v814 = vld [vmem:[%s554 + $0x10] sm:$0xc]
          %v815 = vpack.c.bf16 %v811, %v811
          %816 = vmatprep.subr.bf16.mxu0 %v656
          %817 = vmatpush1.bf16.msra.mxu0 %v655
          %818 = vmatprep.subr.bf16.mxu0 %v659
          %819 = vmatpush1.bf16.msra.mxu0 %v658
          %820 = vmatprep.subr.bf16.mxu0 %v662
          %821 = vmatpush1.bf16.msra.mxu0 %v661
          %822 = vmatprep.subr.bf16.mxu0 %v665
          %823 = vmatpush1.bf16.msra.mxu0 %v664
          %824 = vmatprep.subr.bf16.mxu0 %v668
          %825 = vmatpush1.bf16.msra.mxu0 %v667
          %826 = vmatprep.subr.bf16.mxu0 %v671
          %827 = vmatpush1.bf16.msra.mxu0 %v670
          %828 = vmatprep.subr.bf16.mxu0 %v674
          %829 = vmatpush1.bf16.msra.mxu0 %v673
          %830 = vmatprep.subr.bf16.mxu0 %v677
          %831 = vmatpush1.bf16.msra.mxu0 %v676
          %832 = vmatprep.subr.bf16.mxu0 0
          %833 = vmatpush1.bf16.msra.mxu0 0
          %834 = vmatprep.subr.bf16.mxu0 0
          %835 = vmatpush1.bf16.msra.mxu0 0
          %836 = vmatprep.subr.bf16.mxu0 0
          %837 = vmatpush1.bf16.msra.mxu0 0
          %838 = vmatprep.subr.bf16.mxu0 0
          %839 = vmatpush1.bf16.msra.mxu0 0
          %840 = vmatprep.subr.bf16.mxu0 0
          %841 = vmatpush1.bf16.msra.mxu0 0
          %842 = vmatprep.subr.bf16.mxu0 0
          %843 = vmatpush1.bf16.msra.mxu0 0
          %844 = vmatprep.subr.bf16.mxu0 0
          %845 = vmatpush1.bf16.msra.mxu0 0
          %846 = vmatprep.subr.bf16.mxu0 0
          %847 = vmatpush1.bf16.msra.mxu0 0
          %848 = vmatprep.mubr.bf16.mxu0 0
          %849 = vmatmul.mubr.bf16.gmra.mrb[0].mxu0 %v815
          %v850 = vpop.f32.mrb[0].mxu0
          %v851 = vadd.f32 %v563, %v850
          %v852 = vpop.f32.mrb[0].mxu0
          %v853 = vadd.f32 %v567, %v852
          %v854 = vpop.f32.mrb[0].mxu0
          %v855 = vpop.f32.mrb[0].mxu0
          %856 = vdwg.mxu0
          %857 = vmatprep.subr.bf16.mxu0 0
          %858 = vmatpush1.bf16.msra.mxu0 %v657
          %859 = vmatprep.subr.bf16.mxu0 0
          %860 = vmatpush1.bf16.msra.mxu0 %v660
          %861 = vmatprep.subr.bf16.mxu0 0
          %862 = vmatpush1.bf16.msra.mxu0 %v663
          %863 = vmatprep.subr.bf16.mxu0 0
          %864 = vmatpush1.bf16.msra.mxu0 %v666
          %865 = vmatprep.subr.bf16.mxu0 0
          %866 = vmatpush1.bf16.msra.mxu0 %v669
          %867 = vmatprep.subr.bf16.mxu0 0
          %868 = vmatpush1.bf16.msra.mxu0 %v672
          %869 = vmatprep.subr.bf16.mxu0 0
          %870 = vmatpush1.bf16.msra.mxu0 %v675
          %871 = vmatprep.subr.bf16.mxu0 0
          %872 = vmatpush1.bf16.msra.mxu0 %v678
          %873 = vmatprep.subr.bf16.mxu0 0
          %874 = vmatpush1.bf16.msra.mxu0 0
          %875 = vmatprep.subr.bf16.mxu0 0
          %876 = vmatpush1.bf16.msra.mxu0 0
          %877 = vmatprep.subr.bf16.mxu0 0
          %878 = vmatpush1.bf16.msra.mxu0 0
          %879 = vmatprep.subr.bf16.mxu0 0
          %880 = vmatpush1.bf16.msra.mxu0 0
          %881 = vmatprep.subr.bf16.mxu0 0
          %882 = vmatpush1.bf16.msra.mxu0 0
          %883 = vmatprep.subr.bf16.mxu0 0
          %884 = vmatpush1.bf16.msra.mxu0 0
          %885 = vmatprep.subr.bf16.mxu0 0
          %886 = vmatpush1.bf16.msra.mxu0 0
          %887 = vmatprep.subr.bf16.mxu0 0
          %888 = vmatpush1.bf16.msra.mxu0 0
          %889 = vmatprep.mubr.bf16.mxu0 0
          %890 = vmatmul.mubr.bf16.gmra.mrb[0].mxu0 %v815
          %v891 = vpop.f32.mrb[0].mxu0
          %v892 = vadd.f32 %v571, %v891
          %v893 = vpop.f32.mrb[0].mxu0
          %v894 = vpop.f32.mrb[0].mxu0
          %v895 = vpop.f32.mrb[0].mxu0
          %896 = vdwg.mxu0
          %v898 = vrot.slane %v851, 6
          %v900 = vadd.f32 %v812, %v898
          %v901 = vxor.u32 %v900, 2147483648
          %v902 = vmul.f32 %v901, 1.442695
          %v903 = vpow.pop %v902
          %v904 = vadd.f32 %v903, 1.0
          %v905 = vrcp.pop %v904
          %v906 = vmul.f32 1.0, %v905
          %v908 = vrot.slane %v853, 6
          %v910 = vadd.f32 %v813, %v908
          %v911 = vxor.u32 %v910, 2147483648
          %v912 = vmul.f32 %v911, 1.442695
          %v913 = vpow.pop %v912
          %v914 = vadd.f32 %v913, 1.0
          %v915 = vrcp.pop %v914
          %v916 = vmul.f32 1.0, %v915
          %v917 = vadd.f32 %v814, %v802
          %v919 = vrot.slane %v892, 6
          %v921 = vmul.f32 %v906, %v919
          %v922 = vadd.f32 %v917, %v921
          %v923 = vtanh.pop %v922
          %v924 = vsub.f32 1.0, %v916
          %v925 = vmul.f32 %v924, %v923
          %v927 = vrot.slane %v811, 6
          %v929 = vmul.f32 %v916, %v927
          %v930 = vadd.f32 %v925, %v929
          %v931 = vld [vmem:[%s554] sm:$0x30]
          %v932 = vld [vmem:[%s554 + $0x8] sm:$0x30]
          %v933 = vld [vmem:[%s554 + $0x10] sm:$0x30]
          %v934 = vpack.c.bf16 %v930, %v930
          %v936 = vrot.slane %v934, 1
          %938 = vmatprep.subr.bf16.mxu0 %v656
          %939 = vmatpush1.bf16.msra.mxu0 %v655
          %940 = vmatprep.subr.bf16.mxu0 %v659
          %941 = vmatpush1.bf16.msra.mxu0 %v658
          %942 = vmatprep.subr.bf16.mxu0 %v662
          %943 = vmatpush1.bf16.msra.mxu0 %v661
          %944 = vmatprep.subr.bf16.mxu0 %v665
          %945 = vmatpush1.bf16.msra.mxu0 %v664
          %946 = vmatprep.subr.bf16.mxu0 %v668
          %947 = vmatpush1.bf16.msra.mxu0 %v667
          %948 = vmatprep.subr.bf16.mxu0 %v671
          %949 = vmatpush1.bf16.msra.mxu0 %v670
          %950 = vmatprep.subr.bf16.mxu0 %v674
          %951 = vmatpush1.bf16.msra.mxu0 %v673
          %952 = vmatprep.subr.bf16.mxu0 %v677
          %953 = vmatpush1.bf16.msra.mxu0 %v676
          %954 = vmatprep.subr.bf16.mxu0 0
          %955 = vmatpush1.bf16.msra.mxu0 0
          %956 = vmatprep.subr.bf16.mxu0 0
          %957 = vmatpush1.bf16.msra.mxu0 0
          %958 = vmatprep.subr.bf16.mxu0 0
          %959 = vmatpush1.bf16.msra.mxu0 0
          %960 = vmatprep.subr.bf16.mxu0 0
          %961 = vmatpush1.bf16.msra.mxu0 0
          %962 = vmatprep.subr.bf16.mxu0 0
          %963 = vmatpush1.bf16.msra.mxu0 0
          %964 = vmatprep.subr.bf16.mxu0 0
          %965 = vmatpush1.bf16.msra.mxu0 0
          %966 = vmatprep.subr.bf16.mxu0 0
          %967 = vmatpush1.bf16.msra.mxu0 0
          %968 = vmatprep.subr.bf16.mxu0 0
          %969 = vmatpush1.bf16.msra.mxu0 0
          %970 = vmatprep.mubr.bf16.mxu0 0
          %971 = vmatmul.mubr.bf16.gmra.mrb[0].mxu0 %v936
          %v972 = vpop.f32.mrb[0].mxu0
          %v973 = vadd.f32 %v563, %v972
          %v974 = vpop.f32.mrb[0].mxu0
          %v975 = vadd.f32 %v567, %v974
          %v976 = vpop.f32.mrb[0].mxu0
          %v977 = vpop.f32.mrb[0].mxu0
          %978 = vdwg.mxu0
          %979 = vmatprep.subr.bf16.mxu0 0
          %980 = vmatpush1.bf16.msra.mxu0 %v657
          %981 = vmatprep.subr.bf16.mxu0 0
          %982 = vmatpush1.bf16.msra.mxu0 %v660
          %983 = vmatprep.subr.bf16.mxu0 0
          %984 = vmatpush1.bf16.msra.mxu0 %v663
          %985 = vmatprep.subr.bf16.mxu0 0
          %986 = vmatpush1.bf16.msra.mxu0 %v666
          %987 = vmatprep.subr.bf16.mxu0 0
          %988 = vmatpush1.bf16.msra.mxu0 %v669
          %989 = vmatprep.subr.bf16.mxu0 0
          %990 = vmatpush1.bf16.msra.mxu0 %v672
          %991 = vmatprep.subr.bf16.mxu0 0
          %992 = vmatpush1.bf16.msra.mxu0 %v675
          %993 = vmatprep.subr.bf16.mxu0 0
          %994 = vmatpush1.bf16.msra.mxu0 %v678
          %995 = vmatprep.subr.bf16.mxu0 0
          %996 = vmatpush1.bf16.msra.mxu0 0
          %997 = vmatprep.subr.bf16.mxu0 0
          %998 = vmatpush1.bf16.msra.mxu0 0
          %999 = vmatprep.subr.bf16.mxu0 0
          %1000 = vmatpush1.bf16.msra.mxu0 0
          %1001 = vmatprep.subr.bf16.mxu0 0
          %1002 = vmatpush1.bf16.msra.mxu0 0
          %1003 = vmatprep.subr.bf16.mxu0 0
          %1004 = vmatpush1.bf16.msra.mxu0 0
          %1005 = vmatprep.subr.bf16.mxu0 0
          %1006 = vmatpush1.bf16.msra.mxu0 0
          %1007 = vmatprep.subr.bf16.mxu0 0
          %1008 = vmatpush1.bf16.msra.mxu0 0
          %1009 = vmatprep.subr.bf16.mxu0 0
          %1010 = vmatpush1.bf16.msra.mxu0 0
          %1011 = vmatprep.mubr.bf16.mxu0 0
          %1012 = vmatmul.mubr.bf16.gmra.mrb[0].mxu0 %v936
          %v1013 = vpop.f32.mrb[0].mxu0
          %v1014 = vadd.f32 %v571, %v1013
          %v1015 = vpop.f32.mrb[0].mxu0
          %v1016 = vpop.f32.mrb[0].mxu0
          %v1017 = vpop.f32.mrb[0].mxu0
          %1018 = vdwg.mxu0
          %v1020 = vrot.slane %v973, 4
          %v1022 = vadd.f32 %v931, %v1020
          %v1023 = vxor.u32 %v1022, 2147483648
          %v1024 = vmul.f32 %v1023, 1.442695
          %v1025 = vpow.pop %v1024
          %v1026 = vadd.f32 %v1025, 1.0
          %v1027 = vrcp.pop %v1026
          %v1028 = vmul.f32 1.0, %v1027
          %v1030 = vrot.slane %v975, 4
          %v1032 = vadd.f32 %v932, %v1030
          %v1033 = vxor.u32 %v1032, 2147483648
          %v1034 = vmul.f32 %v1033, 1.442695
          %v1035 = vpow.pop %v1034
          %v1036 = vadd.f32 %v1035, 1.0
          %v1037 = vrcp.pop %v1036
          %v1038 = vmul.f32 1.0, %v1037
          %v1039 = vadd.f32 %v933, %v802
          %v1041 = vrot.slane %v1014, 4
          %v1043 = vmul.f32 %v1028, %v1041
          %v1044 = vadd.f32 %v1039, %v1043
          %v1045 = vtanh.pop %v1044
          %v1046 = vsub.f32 1.0, %v1038
          %v1047 = vmul.f32 %v1046, %v1045
          %v1049 = vrot.slane %v930, 6
          %v1051 = vmul.f32 %v1038, %v1049
          %v1052 = vadd.f32 %v1047, %v1051
          %v1053 = vld [vmem:[%s554] sm:$0xc0]
          %v1054 = vld [vmem:[%s554 + $0x8] sm:$0xc0]
          %v1055 = vld [vmem:[%s554 + $0x10] sm:$0xc0]
          %v1056 = vpack.c.bf16 %v1052, %v1052
          %v1058 = vrot.slane %v1056, 2
          %1060 = vmatprep.subr.bf16.mxu0 %v656
          %1061 = vmatpush1.bf16.msra.mxu0 %v655
          %1062 = vmatprep.subr.bf16.mxu0 %v659
          %1063 = vmatpush1.bf16.msra.mxu0 %v658
          %1064 = vmatprep.subr.bf16.mxu0 %v662
          %1065 = vmatpush1.bf16.msra.mxu0 %v661
          %1066 = vmatprep.subr.bf16.mxu0 %v665
          %1067 = vmatpush1.bf16.msra.mxu0 %v664
          %1068 = vmatprep.subr.bf16.mxu0 %v668
          %1069 = vmatpush1.bf16.msra.mxu0 %v667
          %1070 = vmatprep.subr.bf16.mxu0 %v671
          %1071 = vmatpush1.bf16.msra.mxu0 %v670
          %1072 = vmatprep.subr.bf16.mxu0 %v674
          %1073 = vmatpush1.bf16.msra.mxu0 %v673
          %1074 = vmatprep.subr.bf16.mxu0 %v677
          %1075 = vmatpush1.bf16.msra.mxu0 %v676
          %1076 = vmatprep.subr.bf16.mxu0 0
          %1077 = vmatpush1.bf16.msra.mxu0 0
          %1078 = vmatprep.subr.bf16.mxu0 0
          %1079 = vmatpush1.bf16.msra.mxu0 0
          %1080 = vmatprep.subr.bf16.mxu0 0
          %1081 = vmatpush1.bf16.msra.mxu0 0
          %1082 = vmatprep.subr.bf16.mxu0 0
          %1083 = vmatpush1.bf16.msra.mxu0 0
          %1084 = vmatprep.subr.bf16.mxu0 0
          %1085 = vmatpush1.bf16.msra.mxu0 0
          %1086 = vmatprep.subr.bf16.mxu0 0
          %1087 = vmatpush1.bf16.msra.mxu0 0
          %1088 = vmatprep.subr.bf16.mxu0 0
          %1089 = vmatpush1.bf16.msra.mxu0 0
          %1090 = vmatprep.subr.bf16.mxu0 0
          %1091 = vmatpush1.bf16.msra.mxu0 0
          %1092 = vmatprep.mubr.bf16.mxu0 0
          %1093 = vmatmul.mubr.bf16.gmra.mrb[0].mxu0 %v1058
          %v1094 = vpop.f32.mrb[0].mxu0
          %v1095 = vadd.f32 %v563, %v1094
          %v1096 = vpop.f32.mrb[0].mxu0
          %v1097 = vadd.f32 %v567, %v1096
          %v1098 = vpop.f32.mrb[0].mxu0
          %v1099 = vpop.f32.mrb[0].mxu0
          %1100 = vdwg.mxu0
          %1101 = vmatprep.subr.bf16.mxu0 0
          %1102 = vmatpush1.bf16.msra.mxu0 %v657
          %1103 = vmatprep.subr.bf16.mxu0 0
          %1104 = vmatpush1.bf16.msra.mxu0 %v660
          %1105 = vmatprep.subr.bf16.mxu0 0
          %1106 = vmatpush1.bf16.msra.mxu0 %v663
          %1107 = vmatprep.subr.bf16.mxu0 0
          %1108 = vmatpush1.bf16.msra.mxu0 %v666
          %1109 = vmatprep.subr.bf16.mxu0 0
          %1110 = vmatpush1.bf16.msra.mxu0 %v669
          %1111 = vmatprep.subr.bf16.mxu0 0
          %1112 = vmatpush1.bf16.msra.mxu0 %v672
          %1113 = vmatprep.subr.bf16.mxu0 0
          %1114 = vmatpush1.bf16.msra.mxu0 %v675
          %1115 = vmatprep.subr.bf16.mxu0 0
          %1116 = vmatpush1.bf16.msra.mxu0 %v678
          %1117 = vmatprep.subr.bf16.mxu0 0
          %1118 = vmatpush1.bf16.msra.mxu0 0
          %1119 = vmatprep.subr.bf16.mxu0 0
          %1120 = vmatpush1.bf16.msra.mxu0 0
          %1121 = vmatprep.subr.bf16.mxu0 0
          %1122 = vmatpush1.bf16.msra.mxu0 0
          %1123 = vmatprep.subr.bf16.mxu0 0
          %1124 = vmatpush1.bf16.msra.mxu0 0
          %1125 = vmatprep.subr.bf16.mxu0 0
          %1126 = vmatpush1.bf16.msra.mxu0 0
          %1127 = vmatprep.subr.bf16.mxu0 0
          %1128 = vmatpush1.bf16.msra.mxu0 0
          %1129 = vmatprep.subr.bf16.mxu0 0
          %1130 = vmatpush1.bf16.msra.mxu0 0
          %1131 = vmatprep.subr.bf16.mxu0 0
          %1132 = vmatpush1.bf16.msra.mxu0 0
          %1133 = vmatprep.mubr.bf16.mxu0 0
          %1134 = vmatmul.mubr.bf16.gmra.mrb[0].mxu0 %v1058
          %v1135 = vpop.f32.mrb[0].mxu0
          %v1136 = vadd.f32 %v571, %v1135
          %v1137 = vpop.f32.mrb[0].mxu0
          %v1138 = vpop.f32.mrb[0].mxu0
          %v1139 = vpop.f32.mrb[0].mxu0
          %1140 = vdwg.mxu0
          %v1142 = vrot.slane %v1095, 2
          %v1144 = vadd.f32 %v1053, %v1142
          %v1145 = vxor.u32 %v1144, 2147483648
          %v1146 = vmul.f32 %v1145, 1.442695
          %v1147 = vpow.pop %v1146
          %v1148 = vadd.f32 %v1147, 1.0
          %v1149 = vrcp.pop %v1148
          %v1150 = vmul.f32 1.0, %v1149
          %v1152 = vrot.slane %v1097, 2
          %v1154 = vadd.f32 %v1054, %v1152
          %v1155 = vxor.u32 %v1154, 2147483648
          %v1156 = vmul.f32 %v1155, 1.442695
          %v1157 = vpow.pop %v1156
          %v1158 = vadd.f32 %v1157, 1.0
          %v1159 = vrcp.pop %v1158
          %v1160 = vmul.f32 1.0, %v1159
          %v1161 = vadd.f32 %v1055, %v802
          %v1163 = vrot.slane %v1136, 2
          %v1165 = vmul.f32 %v1150, %v1163
          %v1166 = vadd.f32 %v1161, %v1165
          %v1167 = vtanh.pop %v1166
          %v1168 = vsub.f32 1.0, %v1160
          %v1169 = vmul.f32 %v1168, %v1167
          %v1171 = vrot.slane %v1052, 6
          %v1173 = vmul.f32 %v1160, %v1171
          %v1174 = vadd.f32 %v1169, %v1173
          %v1175 = vld [vmem:[%s554 + $0x18] sm:$0x3]
          %v1176 = vld [vmem:[%s554 + $0x20] sm:$0x3]
          %v1177 = vld [vmem:[%s554 + $0x28] sm:$0x3]
          %v1178 = vpack.c.bf16 %v1174, %v1174
          %v1180 = vrot.slane %v1178, 3
          %1182 = vmatprep.subr.bf16.mxu0 %v656
          %1183 = vmatpush1.bf16.msra.mxu0 %v655
          %1184 = vmatprep.subr.bf16.mxu0 %v659
          %1185 = vmatpush1.bf16.msra.mxu0 %v658
          %1186 = vmatprep.subr.bf16.mxu0 %v662
          %1187 = vmatpush1.bf16.msra.mxu0 %v661
          %1188 = vmatprep.subr.bf16.mxu0 %v665
          %1189 = vmatpush1.bf16.msra.mxu0 %v664
          %1190 = vmatprep.subr.bf16.mxu0 %v668
          %1191 = vmatpush1.bf16.msra.mxu0 %v667
          %1192 = vmatprep.subr.bf16.mxu0 %v671
          %1193 = vmatpush1.bf16.msra.mxu0 %v670
          %1194 = vmatprep.subr.bf16.mxu0 %v674
          %1195 = vmatpush1.bf16.msra.mxu0 %v673
          %1196 = vmatprep.subr.bf16.mxu0 %v677
          %1197 = vmatpush1.bf16.msra.mxu0 %v676
          %1198 = vmatprep.subr.bf16.mxu0 0
          %1199 = vmatpush1.bf16.msra.mxu0 0
          %1200 = vmatprep.subr.bf16.mxu0 0
          %1201 = vmatpush1.bf16.msra.mxu0 0
          %1202 = vmatprep.subr.bf16.mxu0 0
          %1203 = vmatpush1.bf16.msra.mxu0 0
          %1204 = vmatprep.subr.bf16.mxu0 0
          %1205 = vmatpush1.bf16.msra.mxu0 0
          %1206 = vmatprep.subr.bf16.mxu0 0
          %1207 = vmatpush1.bf16.msra.mxu0 0
          %1208 = vmatprep.subr.bf16.mxu0 0
          %1209 = vmatpush1.bf16.msra.mxu0 0
          %1210 = vmatprep.subr.bf16.mxu0 0
          %1211 = vmatpush1.bf16.msra.mxu0 0
          %1212 = vmatprep.subr.bf16.mxu0 0
          %1213 = vmatpush1.bf16.msra.mxu0 0
          %1214 = vmatprep.mubr.bf16.mxu0 0
          %1215 = vmatmul.mubr.bf16.gmra.mrb[0].mxu0 %v1180
          %v1216 = vpop.f32.mrb[0].mxu0
          %v1217 = vadd.f32 %v563, %v1216
          %v1218 = vpop.f32.mrb[0].mxu0
          %v1219 = vadd.f32 %v567, %v1218
          %v1220 = vpop.f32.mrb[0].mxu0
          %v1221 = vpop.f32.mrb[0].mxu0
          %1222 = vdwg.mxu0
          %1223 = vmatprep.subr.bf16.mxu0 0
          %1224 = vmatpush1.bf16.msra.mxu0 %v657
          %1225 = vmatprep.subr.bf16.mxu0 0
          %1226 = vmatpush1.bf16.msra.mxu0 %v660
          %1227 = vmatprep.subr.bf16.mxu0 0
          %1228 = vmatpush1.bf16.msra.mxu0 %v663
          %1229 = vmatprep.subr.bf16.mxu0 0
          %1230 = vmatpush1.bf16.msra.mxu0 %v666
          %1231 = vmatprep.subr.bf16.mxu0 0
          %1232 = vmatpush1.bf16.msra.mxu0 %v669
          %1233 = vmatprep.subr.bf16.mxu0 0
          %1234 = vmatpush1.bf16.msra.mxu0 %v672
          %1235 = vmatprep.subr.bf16.mxu0 0
          %1236 = vmatpush1.bf16.msra.mxu0 %v675
          %1237 = vmatprep.subr.bf16.mxu0 0
          %1238 = vmatpush1.bf16.msra.mxu0 %v678
          %1239 = vmatprep.subr.bf16.mxu0 0
          %1240 = vmatpush1.bf16.msra.mxu0 0
          %1241 = vmatprep.subr.bf16.mxu0 0
          %1242 = vmatpush1.bf16.msra.mxu0 0
          %1243 = vmatprep.subr.bf16.mxu0 0
          %1244 = vmatpush1.bf16.msra.mxu0 0
          %1245 = vmatprep.subr.bf16.mxu0 0
          %1246 = vmatpush1.bf16.msra.mxu0 0
          %1247 = vmatprep.subr.bf16.mxu0 0
          %1248 = vmatpush1.bf16.msra.mxu0 0
          %1249 = vmatprep.subr.bf16.mxu0 0
          %1250 = vmatpush1.bf16.msra.mxu0 0
          %1251 = vmatprep.subr.bf16.mxu0 0
          %1252 = vmatpush1.bf16.msra.mxu0 0
          %1253 = vmatprep.subr.bf16.mxu0 0
          %1254 = vmatpush1.bf16.msra.mxu0 0
          %1255 = vmatprep.mubr.bf16.mxu0 0
          %1256 = vmatmul.mubr.bf16.gmra.mrb[0].mxu0 %v1180
          %v1257 = vpop.f32.mrb[0].mxu0
          %v1258 = vadd.f32 %v571, %v1257
          %v1259 = vpop.f32.mrb[0].mxu0
          %v1260 = vpop.f32.mrb[0].mxu0
          %v1261 = vpop.f32.mrb[0].mxu0
          %1262 = vdwg.mxu0
          %v1263 = vadd.f32 %v1175, %v1217
          %v1264 = vxor.u32 %v1263, 2147483648
          %v1265 = vmul.f32 %v1264, 1.442695
          %v1266 = vpow.pop %v1265
          %v1267 = vadd.f32 %v1266, 1.0
          %v1268 = vrcp.pop %v1267
          %v1269 = vmul.f32 1.0, %v1268
          %v1270 = vadd.f32 %v1176, %v1219
          %v1271 = vxor.u32 %v1270, 2147483648
          %v1272 = vmul.f32 %v1271, 1.442695
          %v1273 = vpow.pop %v1272
          %v1274 = vadd.f32 %v1273, 1.0
          %v1275 = vrcp.pop %v1274
          %v1276 = vmul.f32 1.0, %v1275
          %v1277 = vadd.f32 %v1177, %v802
          %v1278 = vmul.f32 %v1269, %v1258
          %v1279 = vadd.f32 %v1277, %v1278
          %v1280 = vtanh.pop %v1279
          %v1281 = vsub.f32 1.0, %v1276
          %v1282 = vmul.f32 %v1281, %v1280
          %v1284 = vrot.slane %v1174, 6
          %v1286 = vmul.f32 %v1276, %v1284
          %v1287 = vadd.f32 %v1282, %v1286
          %v1288 = vld [vmem:[%s554 + $0x18] sm:$0xc]
          %v1289 = vld [vmem:[%s554 + $0x20] sm:$0xc]
          %v1290 = vld [vmem:[%s554 + $0x28] sm:$0xc]
          %v1291 = vpack.c.bf16 %v1287, %v1287
          %1292 = vmatprep.subr.bf16.mxu0 %v656
          %1293 = vmatpush1.bf16.msra.mxu0 %v655
          %1294 = vmatprep.subr.bf16.mxu0 %v659
          %1295 = vmatpush1.bf16.msra.mxu0 %v658
          %1296 = vmatprep.subr.bf16.mxu0 %v662
          %1297 = vmatpush1.bf16.msra.mxu0 %v661
          %1298 = vmatprep.subr.bf16.mxu0 %v665
          %1299 = vmatpush1.bf16.msra.mxu0 %v664
          %1300 = vmatprep.subr.bf16.mxu0 %v668
          %1301 = vmatpush1.bf16.msra.mxu0 %v667
          %1302 = vmatprep.subr.bf16.mxu0 %v671
          %1303 = vmatpush1.bf16.msra.mxu0 %v670
          %1304 = vmatprep.subr.bf16.mxu0 %v674
          %1305 = vmatpush1.bf16.msra.mxu0 %v673
          %1306 = vmatprep.subr.bf16.mxu0 %v677
          %1307 = vmatpush1.bf16.msra.mxu0 %v676
          %1308 = vmatprep.subr.bf16.mxu0 0
          %1309 = vmatpush1.bf16.msra.mxu0 0
          %1310 = vmatprep.subr.bf16.mxu0 0
          %1311 = vmatpush1.bf16.msra.mxu0 0
          %1312 = vmatprep.subr.bf16.mxu0 0
          %1313 = vmatpush1.bf16.msra.mxu0 0
          %1314 = vmatprep.subr.bf16.mxu0 0
          %1315 = vmatpush1.bf16.msra.mxu0 0
          %1316 = vmatprep.subr.bf16.mxu0 0
          %1317 = vmatpush1.bf16.msra.mxu0 0
          %1318 = vmatprep.subr.bf16.mxu0 0
          %1319 = vmatpush1.bf16.msra.mxu0 0
          %1320 = vmatprep.subr.bf16.mxu0 0
          %1321 = vmatpush1.bf16.msra.mxu0 0
          %1322 = vmatprep.subr.bf16.mxu0 0
          %1323 = vmatpush1.bf16.msra.mxu0 0
          %1324 = vmatprep.mubr.bf16.mxu0 0
          %1325 = vmatmul.mubr.bf16.gmra.mrb[0].mxu0 %v1291
          %v1326 = vpop.f32.mrb[0].mxu0
          %v1327 = vadd.f32 %v563, %v1326
          %v1328 = vpop.f32.mrb[0].mxu0
          %v1329 = vadd.f32 %v567, %v1328
          %v1330 = vpop.f32.mrb[0].mxu0
          %v1331 = vpop.f32.mrb[0].mxu0
          %1332 = vdwg.mxu0
          %1333 = vmatprep.subr.bf16.mxu0 0
          %1334 = vmatpush1.bf16.msra.mxu0 %v657
          %1335 = vmatprep.subr.bf16.mxu0 0
          %1336 = vmatpush1.bf16.msra.mxu0 %v660
          %1337 = vmatprep.subr.bf16.mxu0 0
          %1338 = vmatpush1.bf16.msra.mxu0 %v663
          %1339 = vmatprep.subr.bf16.mxu0 0
          %1340 = vmatpush1.bf16.msra.mxu0 %v666
          %1341 = vmatprep.subr.bf16.mxu0 0
          %1342 = vmatpush1.bf16.msra.mxu0 %v669
          %1343 = vmatprep.subr.bf16.mxu0 0
          %1344 = vmatpush1.bf16.msra.mxu0 %v672
          %1345 = vmatprep.subr.bf16.mxu0 0
          %1346 = vmatpush1.bf16.msra.mxu0 %v675
          %1347 = vmatprep.subr.bf16.mxu0 0
          %1348 = vmatpush1.bf16.msra.mxu0 %v678
          %1349 = vmatprep.subr.bf16.mxu0 0
          %1350 = vmatpush1.bf16.msra.mxu0 0
          %1351 = vmatprep.subr.bf16.mxu0 0
          %1352 = vmatpush1.bf16.msra.mxu0 0
          %1353 = vmatprep.subr.bf16.mxu0 0
          %1354 = vmatpush1.bf16.msra.mxu0 0
          %1355 = vmatprep.subr.bf16.mxu0 0
          %1356 = vmatpush1.bf16.msra.mxu0 0
          %1357 = vmatprep.subr.bf16.mxu0 0
          %1358 = vmatpush1.bf16.msra.mxu0 0
          %1359 = vmatprep.subr.bf16.mxu0 0
          %1360 = vmatpush1.bf16.msra.mxu0 0
          %1361 = vmatprep.subr.bf16.mxu0 0
          %1362 = vmatpush1.bf16.msra.mxu0 0
          %1363 = vmatprep.subr.bf16.mxu0 0
          %1364 = vmatpush1.bf16.msra.mxu0 0
          %1365 = vmatprep.mubr.bf16.mxu0 0
          %1366 = vmatmul.mubr.bf16.gmra.mrb[0].mxu0 %v1291
          %v1367 = vpop.f32.mrb[0].mxu0
          %v1368 = vadd.f32 %v571, %v1367
          %v1369 = vpop.f32.mrb[0].mxu0
          %v1370 = vpop.f32.mrb[0].mxu0
          %v1371 = vpop.f32.mrb[0].mxu0
          %1372 = vdwg.mxu0
          %v1374 = vrot.slane %v1327, 6
          %v1376 = vadd.f32 %v1288, %v1374
          %v1377 = vxor.u32 %v1376, 2147483648
          %v1378 = vmul.f32 %v1377, 1.442695
          %v1379 = vpow.pop %v1378
          %v1380 = vadd.f32 %v1379, 1.0
          %v1381 = vrcp.pop %v1380
          %v1382 = vmul.f32 1.0, %v1381
          %v1384 = vrot.slane %v1329, 6
          %v1386 = vadd.f32 %v1289, %v1384
          %v1387 = vxor.u32 %v1386, 2147483648
          %v1388 = vmul.f32 %v1387, 1.442695
          %v1389 = vpow.pop %v1388
          %v1390 = vadd.f32 %v1389, 1.0
          %v1391 = vrcp.pop %v1390
          %v1392 = vmul.f32 1.0, %v1391
          %v1393 = vadd.f32 %v1290, %v802
          %v1395 = vrot.slane %v1368, 6
          %v1397 = vmul.f32 %v1382, %v1395
          %v1398 = vadd.f32 %v1393, %v1397
          %v1399 = vtanh.pop %v1398
          %v1400 = vsub.f32 1.0, %v1392
          %v1401 = vmul.f32 %v1400, %v1399
          %v1403 = vrot.slane %v1287, 6
          %v1405 = vmul.f32 %v1392, %v1403
          %v1406 = vadd.f32 %v1401, %v1405
          %v1407 = vld [vmem:[%s554 + $0x18] sm:$0x30]
          %v1408 = vld [vmem:[%s554 + $0x20] sm:$0x30]
          %v1409 = vld [vmem:[%s554 + $0x28] sm:$0x30]
          %v1410 = vpack.c.bf16 %v1406, %v1406
          %v1412 = vrot.slane %v1410, 1
          %1414 = vmatprep.subr.bf16.mxu0 %v656
          %1415 = vmatpush1.bf16.msra.mxu0 %v655
          %1416 = vmatprep.subr.bf16.mxu0 %v659
          %1417 = vmatpush1.bf16.msra.mxu0 %v658
          %1418 = vmatprep.subr.bf16.mxu0 %v662
          %1419 = vmatpush1.bf16.msra.mxu0 %v661
          %1420 = vmatprep.subr.bf16.mxu0 %v665
          %1421 = vmatpush1.bf16.msra.mxu0 %v664
          %1422 = vmatprep.subr.bf16.mxu0 %v668
          %1423 = vmatpush1.bf16.msra.mxu0 %v667
          %1424 = vmatprep.subr.bf16.mxu0 %v671
          %1425 = vmatpush1.bf16.msra.mxu0 %v670
          %1426 = vmatprep.subr.bf16.mxu0 %v674
          %1427 = vmatpush1.bf16.msra.mxu0 %v673
          %1428 = vmatprep.subr.bf16.mxu0 %v677
          %1429 = vmatpush1.bf16.msra.mxu0 %v676
          %1430 = vmatprep.subr.bf16.mxu0 0
          %1431 = vmatpush1.bf16.msra.mxu0 0
          %1432 = vmatprep.subr.bf16.mxu0 0
          %1433 = vmatpush1.bf16.msra.mxu0 0
          %1434 = vmatprep.subr.bf16.mxu0 0
          %1435 = vmatpush1.bf16.msra.mxu0 0
          %1436 = vmatprep.subr.bf16.mxu0 0
          %1437 = vmatpush1.bf16.msra.mxu0 0
          %1438 = vmatprep.subr.bf16.mxu0 0
          %1439 = vmatpush1.bf16.msra.mxu0 0
          %1440 = vmatprep.subr.bf16.mxu0 0
          %1441 = vmatpush1.bf16.msra.mxu0 0
          %1442 = vmatprep.subr.bf16.mxu0 0
          %1443 = vmatpush1.bf16.msra.mxu0 0
          %1444 = vmatprep.subr.bf16.mxu0 0
          %1445 = vmatpush1.bf16.msra.mxu0 0
          %1446 = vmatprep.mubr.bf16.mxu0 0
          %1447 = vmatmul.mubr.bf16.gmra.mrb[0].mxu0 %v1412
          %v1448 = vpop.f32.mrb[0].mxu0
          %v1449 = vadd.f32 %v563, %v1448
          %v1450 = vpop.f32.mrb[0].mxu0
          %v1451 = vadd.f32 %v567, %v1450
          %v1452 = vpop.f32.mrb[0].mxu0
          %v1453 = vpop.f32.mrb[0].mxu0
          %1454 = vdwg.mxu0
          %1455 = vmatprep.subr.bf16.mxu0 0
          %1456 = vmatpush1.bf16.msra.mxu0 %v657
          %1457 = vmatprep.subr.bf16.mxu0 0
          %1458 = vmatpush1.bf16.msra.mxu0 %v660
          %1459 = vmatprep.subr.bf16.mxu0 0
          %1460 = vmatpush1.bf16.msra.mxu0 %v663
          %1461 = vmatprep.subr.bf16.mxu0 0
          %1462 = vmatpush1.bf16.msra.mxu0 %v666
          %1463 = vmatprep.subr.bf16.mxu0 0
          %1464 = vmatpush1.bf16.msra.mxu0 %v669
          %1465 = vmatprep.subr.bf16.mxu0 0
          %1466 = vmatpush1.bf16.msra.mxu0 %v672
          %1467 = vmatprep.subr.bf16.mxu0 0
          %1468 = vmatpush1.bf16.msra.mxu0 %v675
          %1469 = vmatprep.subr.bf16.mxu0 0
          %1470 = vmatpush1.bf16.msra.mxu0 %v678
          %1471 = vmatprep.subr.bf16.mxu0 0
          %1472 = vmatpush1.bf16.msra.mxu0 0
          %1473 = vmatprep.subr.bf16.mxu0 0
          %1474 = vmatpush1.bf16.msra.mxu0 0
          %1475 = vmatprep.subr.bf16.mxu0 0
          %1476 = vmatpush1.bf16.msra.mxu0 0
          %1477 = vmatprep.subr.bf16.mxu0 0
          %1478 = vmatpush1.bf16.msra.mxu0 0
          %1479 = vmatprep.subr.bf16.mxu0 0
          %1480 = vmatpush1.bf16.msra.mxu0 0
          %1481 = vmatprep.subr.bf16.mxu0 0
          %1482 = vmatpush1.bf16.msra.mxu0 0
          %1483 = vmatprep.subr.bf16.mxu0 0
          %1484 = vmatpush1.bf16.msra.mxu0 0
          %1485 = vmatprep.subr.bf16.mxu0 0
          %1486 = vmatpush1.bf16.msra.mxu0 0
          %1487 = vmatprep.mubr.bf16.mxu0 0
          %1488 = vmatmul.mubr.bf16.gmra.mrb[0].mxu0 %v1412
          %v1489 = vpop.f32.mrb[0].mxu0
          %v1490 = vadd.f32 %v571, %v1489
          %v1491 = vpop.f32.mrb[0].mxu0
          %v1492 = vpop.f32.mrb[0].mxu0
          %v1493 = vpop.f32.mrb[0].mxu0
          %1494 = vdwg.mxu0
          %v1496 = vrot.slane %v1449, 4
          %v1498 = vadd.f32 %v1407, %v1496
          %v1499 = vxor.u32 %v1498, 2147483648
          %v1500 = vmul.f32 %v1499, 1.442695
          %v1501 = vpow.pop %v1500
          %v1502 = vadd.f32 %v1501, 1.0
          %v1503 = vrcp.pop %v1502
          %v1504 = vmul.f32 1.0, %v1503
          %v1506 = vrot.slane %v1451, 4
          %v1508 = vadd.f32 %v1408, %v1506
          %v1509 = vxor.u32 %v1508, 2147483648
          %v1510 = vmul.f32 %v1509, 1.442695
          %v1511 = vpow.pop %v1510
          %v1512 = vadd.f32 %v1511, 1.0
          %v1513 = vrcp.pop %v1512
          %v1514 = vmul.f32 1.0, %v1513
          %v1515 = vadd.f32 %v1409, %v802
          %v1517 = vrot.slane %v1490, 4
          %v1519 = vmul.f32 %v1504, %v1517
          %v1520 = vadd.f32 %v1515, %v1519
          %v1521 = vtanh.pop %v1520
          %v1522 = vsub.f32 1.0, %v1514
          %v1523 = vmul.f32 %v1522, %v1521
          %v1525 = vrot.slane %v1406, 6
          %v1527 = vmul.f32 %v1514, %v1525
          %v1528 = vadd.f32 %v1523, %v1527
          %v1529 = vld [vmem:[%s554 + $0x18] sm:$0xc0]
          %v1530 = vld [vmem:[%s554 + $0x20] sm:$0xc0]
          %v1531 = vld [vmem:[%s554 + $0x28] sm:$0xc0]
          %v1532 = vpack.c.bf16 %v1528, %v1528
          %v1534 = vrot.slane %v1532, 2
          %1536 = vmatprep.subr.bf16.mxu0 %v656
          %1537 = vmatpush1.bf16.msra.mxu0 %v655
          %1538 = vmatprep.subr.bf16.mxu0 %v659
          %1539 = vmatpush1.bf16.msra.mxu0 %v658
          %1540 = vmatprep.subr.bf16.mxu0 %v662
          %1541 = vmatpush1.bf16.msra.mxu0 %v661
          %1542 = vmatprep.subr.bf16.mxu0 %v665
          %1543 = vmatpush1.bf16.msra.mxu0 %v664
          %1544 = vmatprep.subr.bf16.mxu0 %v668
          %1545 = vmatpush1.bf16.msra.mxu0 %v667
          %1546 = vmatprep.subr.bf16.mxu0 %v671
          %1547 = vmatpush1.bf16.msra.mxu0 %v670
          %1548 = vmatprep.subr.bf16.mxu0 %v674
          %1549 = vmatpush1.bf16.msra.mxu0 %v673
          %1550 = vmatprep.subr.bf16.mxu0 %v677
          %1551 = vmatpush1.bf16.msra.mxu0 %v676
          %1552 = vmatprep.subr.bf16.mxu0 0
          %1553 = vmatpush1.bf16.msra.mxu0 0
          %1554 = vmatprep.subr.bf16.mxu0 0
          %1555 = vmatpush1.bf16.msra.mxu0 0
          %1556 = vmatprep.subr.bf16.mxu0 0
          %1557 = vmatpush1.bf16.msra.mxu0 0
          %1558 = vmatprep.subr.bf16.mxu0 0
          %1559 = vmatpush1.bf16.msra.mxu0 0
          %1560 = vmatprep.subr.bf16.mxu0 0
          %1561 = vmatpush1.bf16.msra.mxu0 0
          %1562 = vmatprep.subr.bf16.mxu0 0
          %1563 = vmatpush1.bf16.msra.mxu0 0
          %1564 = vmatprep.subr.bf16.mxu0 0
          %1565 = vmatpush1.bf16.msra.mxu0 0
          %1566 = vmatprep.subr.bf16.mxu0 0
          %1567 = vmatpush1.bf16.msra.mxu0 0
          %1568 = vmatprep.mubr.bf16.mxu0 0
          %1569 = vmatmul.mubr.bf16.gmra.mrb[0].mxu0 %v1534
          %v1570 = vpop.f32.mrb[0].mxu0
          %v1571 = vadd.f32 %v563, %v1570
          %v1572 = vpop.f32.mrb[0].mxu0
          %v1573 = vadd.f32 %v567, %v1572
          %v1574 = vpop.f32.mrb[0].mxu0
          %v1575 = vpop.f32.mrb[0].mxu0
          %1576 = vdwg.mxu0
          %1577 = vmatprep.subr.bf16.mxu0 0
          %1578 = vmatpush1.bf16.msra.mxu0 %v657
          %1579 = vmatprep.subr.bf16.mxu0 0
          %1580 = vmatpush1.bf16.msra.mxu0 %v660
          %1581 = vmatprep.subr.bf16.mxu0 0
          %1582 = vmatpush1.bf16.msra.mxu0 %v663
          %1583 = vmatprep.subr.bf16.mxu0 0
          %1584 = vmatpush1.bf16.msra.mxu0 %v666
          %1585 = vmatprep.subr.bf16.mxu0 0
          %1586 = vmatpush1.bf16.msra.mxu0 %v669
          %1587 = vmatprep.subr.bf16.mxu0 0
          %1588 = vmatpush1.bf16.msra.mxu0 %v672
          %1589 = vmatprep.subr.bf16.mxu0 0
          %1590 = vmatpush1.bf16.msra.mxu0 %v675
          %1591 = vmatprep.subr.bf16.mxu0 0
          %1592 = vmatpush1.bf16.msra.mxu0 %v678
          %1593 = vmatprep.subr.bf16.mxu0 0
          %1594 = vmatpush1.bf16.msra.mxu0 0
          %1595 = vmatprep.subr.bf16.mxu0 0
          %1596 = vmatpush1.bf16.msra.mxu0 0
          %1597 = vmatprep.subr.bf16.mxu0 0
          %1598 = vmatpush1.bf16.msra.mxu0 0
          %1599 = vmatprep.subr.bf16.mxu0 0
          %1600 = vmatpush1.bf16.msra.mxu0 0
          %1601 = vmatprep.subr.bf16.mxu0 0
          %1602 = vmatpush1.bf16.msra.mxu0 0
          %1603 = vmatprep.subr.bf16.mxu0 0
          %1604 = vmatpush1.bf16.msra.mxu0 0
          %1605 = vmatprep.subr.bf16.mxu0 0
          %1606 = vmatpush1.bf16.msra.mxu0 0
          %1607 = vmatprep.subr.bf16.mxu0 0
          %1608 = vmatpush1.bf16.msra.mxu0 0
          %1609 = vmatprep.mubr.bf16.mxu0 0
          %1610 = vmatmul.mubr.bf16.gmra.mrb[0].mxu0 %v1534
          %v1611 = vpop.f32.mrb[0].mxu0
          %v1612 = vadd.f32 %v571, %v1611
          %v1613 = vpop.f32.mrb[0].mxu0
          %v1614 = vpop.f32.mrb[0].mxu0
          %v1615 = vpop.f32.mrb[0].mxu0
          %1616 = vdwg.mxu0
          %v1618 = vrot.slane %v1571, 2
          %v1620 = vadd.f32 %v1529, %v1618
          %v1621 = vxor.u32 %v1620, 2147483648
          %v1622 = vmul.f32 %v1621, 1.442695
          %v1623 = vpow.pop %v1622
          %v1624 = vadd.f32 %v1623, 1.0
          %v1625 = vrcp.pop %v1624
          %v1626 = vmul.f32 1.0, %v1625
          %v1628 = vrot.slane %v1573, 2
          %v1630 = vadd.f32 %v1530, %v1628
          %v1631 = vxor.u32 %v1630, 2147483648
          %v1632 = vmul.f32 %v1631, 1.442695
          %v1633 = vpow.pop %v1632
          %v1634 = vadd.f32 %v1633, 1.0
          %v1635 = vrcp.pop %v1634
          %v1636 = vmul.f32 1.0, %v1635
          %v1637 = vadd.f32 %v1531, %v802
          %v1639 = vrot.slane %v1612, 2
          %v1641 = vmul.f32 %v1626, %v1639
          %v1642 = vadd.f32 %v1637, %v1641
          %v1643 = vtanh.pop %v1642
          %v1644 = vsub.f32 1.0, %v1636
          %v1645 = vmul.f32 %v1644, %v1643
          %v1647 = vrot.slane %v1528, 6
          %v1649 = vmul.f32 %v1636, %v1647
          %v1650 = vadd.f32 %v1645, %v1649
          %1651 = vst [vmem:[#allocation2 - $0x6] sm:$0xc0] %v1650
        $region76: #{tpu_custom_call.1} parent=47 // pred_fallthru
          _
        %p1652 = scmp.eq.s32.totalorder %s24, 1
        // Predicated region
        $region77: #{tpu_custom_call.1} parent=47 // pred_check
          %p1653 = pneg %p1652
        $region78: #{tpu_custom_call.1} parent=47 // pred_check_branch
          %1655 = sbr.rel (%p1653) target = $region80
        $region79: #{tpu_custom_call.1} parent=47 // pred_region
          %v1656 = vld [vmem:[#allocation2] sm:$0x3]
          %v1657 = vpack.c.bf16 %v1656, %v1656
          %v1658 = vld [vmem:[#allocation10] sm:$0xf]
          %v1659 = vld [vmem:[#allocation10 + $0x4] sm:$0xf]
          %v1660 = vld [vmem:[#allocation10 + $0x8] sm:$0xf]
          %v1661 = vld [vmem:[#allocation10 + $0xc] sm:$0xf]
          %v1662 = vld [vmem:[#allocation10 + $0x10] sm:$0xf]
          %v1663 = vld [vmem:[#allocation10 + $0x14] sm:$0xf]
          %v1664 = vld [vmem:[#allocation10 + $0x18] sm:$0xf]
          %v1665 = vld [vmem:[#allocation10 + $0x1c] sm:$0xf]
          %v1666 = vld [vmem:[#allocation10 + $0x20] sm:$0xf]
          %v1667 = vld [vmem:[#allocation10 + $0x24] sm:$0xf]
          %v1668 = vld [vmem:[#allocation10 + $0x28] sm:$0xf]
          %v1669 = vld [vmem:[#allocation10 + $0x2c] sm:$0xf]
          %v1670 = vld [vmem:[#allocation10 + $0x30] sm:$0xf]
          %v1671 = vld [vmem:[#allocation10 + $0x34] sm:$0xf]
          %v1672 = vld [vmem:[#allocation10 + $0x38] sm:$0xf]
          %v1673 = vld [vmem:[#allocation10 + $0x3c] sm:$0xf]
          %v1674 = vld [vmem:[%s6] sm:$0x1]
          %v1676 = vlaneseq
          %v1677 = vshrl.u32 %v1676, 7
          %v1678 = vsub.s32 0, %v1677
          %v1679 = vrot.slane %v1674, %v1678
          %v1697 = vunpack.c.l.b16 %v1658
          %v1698 = vunpack.c.l.b16 %v1659
          %v1699 = vunpack.c.l.b16 %v1660
          %v1700 = vunpack.c.l.b16 %v1661
          %v1701 = vunpack.c.l.b16 %v1662
          %v1702 = vunpack.c.l.b16 %v1663
          %v1703 = vunpack.c.l.b16 %v1664
          %v1704 = vunpack.c.l.b16 %v1665
          %v1705 = vunpack.c.l.b16 %v1666
          %v1706 = vunpack.c.l.b16 %v1667
          %v1707 = vunpack.c.l.b16 %v1668
          %v1708 = vunpack.c.l.b16 %v1669
          %v1709 = vunpack.c.l.b16 %v1670
          %v1710 = vunpack.c.l.b16 %v1671
          %v1711 = vunpack.c.l.b16 %v1672
          %v1712 = vunpack.c.l.b16 %v1673
          %v1713 = vpack.c.b16 %v1698, %v1697
          %v1714 = vpack.c.b16 %v1700, %v1699
          %v1715 = vpack.c.b16 %v1702, %v1701
          %v1716 = vpack.c.b16 %v1704, %v1703
          %v1717 = vpack.c.b16 %v1706, %v1705
          %v1718 = vpack.c.b16 %v1708, %v1707
          %v1719 = vpack.c.b16 %v1710, %v1709
          %v1720 = vpack.c.b16 %v1712, %v1711
          %1729 = vmatprep.subr.bf16.mxu0 0
          %1730 = vmatpush1.bf16.msra.mxu0 %v1713
          %1731 = vmatprep.subr.bf16.mxu0 0
          %1732 = vmatpush1.bf16.msra.mxu0 %v1714
          %1733 = vmatprep.subr.bf16.mxu0 0
          %1734 = vmatpush1.bf16.msra.mxu0 %v1715
          %1735 = vmatprep.subr.bf16.mxu0 0
          %1736 = vmatpush1.bf16.msra.mxu0 %v1716
          %1737 = vmatprep.subr.bf16.mxu0 0
          %1738 = vmatpush1.bf16.msra.mxu0 %v1717
          %1739 = vmatprep.subr.bf16.mxu0 0
          %1740 = vmatpush1.bf16.msra.mxu0 %v1718
          %1741 = vmatprep.subr.bf16.mxu0 0
          %1742 = vmatpush1.bf16.msra.mxu0 %v1719
          %1743 = vmatprep.subr.bf16.mxu0 0
          %1744 = vmatpush1.bf16.msra.mxu0 %v1720
          %1745 = vmatprep.subr.bf16.mxu0 0
          %1746 = vmatpush1.bf16.msra.mxu0 0
          %1747 = vmatprep.subr.bf16.mxu0 0
          %1748 = vmatpush1.bf16.msra.mxu0 0
          %1749 = vmatprep.subr.bf16.mxu0 0
          %1750 = vmatpush1.bf16.msra.mxu0 0
          %1751 = vmatprep.subr.bf16.mxu0 0
          %1752 = vmatpush1.bf16.msra.mxu0 0
          %1753 = vmatprep.subr.bf16.mxu0 0
          %1754 = vmatpush1.bf16.msra.mxu0 0
          %1755 = vmatprep.subr.bf16.mxu0 0
          %1756 = vmatpush1.bf16.msra.mxu0 0
          %1757 = vmatprep.subr.bf16.mxu0 0
          %1758 = vmatpush1.bf16.msra.mxu0 0
          %1759 = vmatprep.subr.bf16.mxu0 0
          %1760 = vmatpush1.bf16.msra.mxu0 0
          %1761 = vmatprep.mubr.bf16.mxu0 0
          %1762 = vmatmul.mubr.bf16.gmra.mrb[0].mxu0 %v1657
          %v1763 = vpop.f32.mrb[0].mxu0
          %v1764 = vadd.f32 %v1679, %v1763
          %v1765 = vpop.f32.mrb[0].mxu0
          %v1766 = vpop.f32.mrb[0].mxu0
          %v1767 = vpop.f32.mrb[0].mxu0
          %1768 = vdwg.mxu0
          %vm1769 = vcmask 1041408
          %v1770 = vsel %vm1769, %v1764, -inf
          %1771 = vmax.xlane.f32.xlu0 %v1770
          %v1772 = vpop.xlane.xlu0 %1771
          %v1773 = vsub.f32 %v1764, %v1772
          %v1774 = vmul.f32 %v1773, 1.442695
          %v1775 = vpow.pop %v1774
          %v1776 = vsel %vm1769, %v1775, 0.0
          %1777 = vadd.xlane.f32.xlu0 %v1776
          %v1778 = vpop.xlane.xlu0 %1777
          %v1779 = vlog2.pop %v1778
          %v1780 = vmul.f32 %v1779, 0.6931472
          %v1781 = vadd.f32 %v1780, %v1772
          %v1782 = vsub.f32 %v1764, %v1781
          %1783 = vst [vmem:[#allocation12] sm:$0x3] %v1782
        $region80: #{tpu_custom_call.1} parent=47 // pred_fallthru
          _
        // Predicated region
        $region81: #{tpu_custom_call.1} parent=47 // pred_check
          %p1784 = pneg %p193
        $region82: #{tpu_custom_call.1} parent=47 // pred_check_branch
          %1786 = sbr.rel (%p1784) target = $region84
        $region83: #{tpu_custom_call.1} parent=47 // pred_region
          %s1788 = ssub.s32 32, 32
          %1789 = vsyncadd [#allocation6], %s1788
          %s1791 = sshll.u32 [#allocation12], 4
          %s1792 = int_to_ptr.vmem [resolvable:$true] %s1791
          %1794 = dma.vmem_to_hbm [thread:$0]  %s1792, 32, %s7, [#allocation6]
        $region84: #{tpu_custom_call.1} parent=47 // pred_fallthru
          _
        // Predicated region
        $region85: #{tpu_custom_call.1} parent=47 // pred_check
          %p1795 = pneg %p193
        $region86: #{tpu_custom_call.1} parent=47 // pred_check_branch
          %1797 = sbr.rel (%p1795) target = $region88
        $region87: #{tpu_custom_call.1} parent=47 // pred_region
          %1798 = dma.done [#allocation6], 32
        $region88: #{tpu_custom_call.1} parent=47 // pred_fallthru
          _
      $region48: #{tpu_custom_call.1} parent=5 // pred_fallthru
        _
      %p1799 = scmp.le.s32.totalorder 2, %s19
      // Predicated region
      $region89: #{tpu_custom_call.1} parent=5 // pred_check
        %p1800 = pneg %p1799
      $region90: #{tpu_custom_call.1} parent=5 // pred_check_branch
        %1802 = sbr.rel (%p1800) target = $region92
      $region91: #{tpu_custom_call.1} parent=5 // pred_region
        %s1803 = ssub.s32 %s19, 2
      $region92: #{tpu_custom_call.1} parent=5 // pred_fallthru
        _
    $region6: #{tpu_custom_call.1} parent=1 // loop_footer
      %s23 = sadd.s32 1, %s19
    $region7: #{tpu_custom_call.1} parent=1 // loop_footer_branch
      %18 = sbr.rel target = $region3
    $region8: #{tpu_custom_call.1} parent=1 // loop_exit
      _
    %1804 = vsyncpa [#allocation5], 1
    %s1805 = scalar_lea.sflag [#allocation5], 1
    %1806 = vsyncpa %s1805, 1
    %1807 = vsyncpa [#allocation8], 1
    %1808 = vsyncpa [#allocation11], 1
    %1809 = vsyncpa [#allocation6], 1
    %s1810 = scalar_lea.sflag [#allocation6], 1
    %1811 = vsyncpa %s1810, 1

</llo_original>
